<compile_context>
chip_gen: v5e
topology: v5e:2x2
jax: 0.10.0
libtpu: 0.0.40
codegen_flags: <defaults>
</compile_context>

<pallas_src>
import math
import functools

import numpy as np
import jax
import jax.numpy as jnp
from jax.experimental import pallas as pl
from jax.experimental.pallas import tpu as pltpu


def pooled_attention_kernel(x_ref, s_ref, w_ref, b_ref, ek_ref, ev_ref,
                            o_ref, a_ref, *, tb, seq, dim_k):
    """One grid step processes `tb` batch elements (tb*seq projection rows)."""
    nh = ek_ref.shape[1]
    tbc = tb * seq

    # Fused [K | V] projection for tb batches in one lane/MXU-dense matmul.
    kv = jnp.dot(x_ref[...], w_ref[...],
                 preferred_element_type=jnp.float32) + b_ref[...]         # (tb*C, Dk+Dv)

    # All heads at once: scores[r, h] = sum_d (kv[r, d] * S_pad[d]) * Ek[d, h].
    # Ek is a head selector over the K lanes with the 1/sqrt(ds) scale folded in.
    scores = jnp.dot(kv * s_ref[...], ek_ref[...],
                     preferred_element_type=jnp.float32)                  # (tb*C, nh)

    # Softmax over the C set elements of each batch, per head.
    s3 = scores.reshape(tb, seq, nh)
    m = jnp.max(s3, axis=1, keepdims=True)
    e = jnp.exp(s3 - m)
    a3 = e / jnp.sum(e, axis=1, keepdims=True)                            # (tb, C, nh)
    a2 = a3.reshape(tbc, nh)

    # O: broadcast each head's weight onto its V lanes (a2 @ Ev) and reduce over C.
    a_exp = jnp.dot(a2, ev_ref[...], preferred_element_type=jnp.float32)  # (tb*C, Dk+Dv)
    o_full = jnp.sum((a_exp * kv).reshape(tb, seq, -1), axis=1)           # (tb, Dk+Dv)
    o_ref[...] = o_full[:, dim_k:]                                        # (tb, Dv)

    # Lane-dense attention store (nh, tb*C).  The transpose of the lane-sparse
    # (tb*C, nh) tensor is done on the MXU via an identity matmul (same
    # q @ k^T dot_general pattern) instead of an XLU relayout chain.
    row = jax.lax.broadcasted_iota(jnp.int32, (nh, nh), 0)
    col = jax.lax.broadcasted_iota(jnp.int32, (nh, nh), 1)
    eye = (row == col).astype(jnp.float32)
    a_ref[...] = jax.lax.dot_general(eye, a2, (((1,), (1,)), ((), ())),
                                     preferred_element_type=jnp.float32)


def pooled_attention(x, S, Wk, bk, Wv, bv, num_heads, *, target_rows=256):
    B, C, H = x.shape
    dim_k = Wk.shape[1]
    dim_v = Wv.shape[1]
    assert dim_k == dim_v, "head split in the reference requires dim_k == dim_v"
    assert dim_v % num_heads == 0, "dim_v must be divisible by num_heads"
    ds = dim_v // num_heads
    d_tot = dim_k + dim_v

    # Batch tile: enough projection rows to fill the MXU (256-row target for
    # v6e/v7x, >=128 for v5e), rounded so block shapes satisfy (8, 128) rules.
    tb = max(8, -(-target_rows // C))
    while (tb % 8) or ((tb * C) % 128):
        tb += 1
    bp = -(-B // tb) * tb
    n_blocks = bp // tb

    x_p = x if bp == B else jnp.pad(x, ((0, bp - B), (0, 0), (0, 0)))
    x2d = x_p.reshape(bp * C, H)                       # fold batch into matmul rows

    # Fused projection weights / bias and zero-padded pooling seed.
    w_kv = jnp.concatenate([Wk, Wv], axis=1)           # (H, Dk+Dv)
    b_kv = jnp.concatenate([bk, bv], axis=1)           # (1, Dk+Dv)
    s_pad = jnp.concatenate([S, jnp.zeros((1, dim_v), S.dtype)], axis=1)

    # Constant head selectors (built once on host).
    d_idx = np.arange(d_tot)
    h_idx = np.arange(num_heads)
    scale = 1.0 / math.sqrt(ds)
    ek_np = ((d_idx[:, None] < dim_k)
             & (d_idx[:, None] // ds == h_idx[None, :])).astype(np.float32) * scale
    ev_np = ((d_idx[None, :] >= dim_k)
             & ((d_idx[None, :] - dim_k) // ds == h_idx[:, None])).astype(np.float32)
    ek = jnp.asarray(ek_np, dtype=jnp.float32)         # (Dk+Dv, nh): K lanes -> head
    ev = jnp.asarray(ev_np, dtype=jnp.float32)         # (nh, Dk+Dv): head  -> V lanes

    kernel = functools.partial(pooled_attention_kernel, tb=tb, seq=C, dim_k=dim_k)

    cost = pl.CostEstimate(
        flops=2 * bp * C * H * d_tot + 4 * bp * C * d_tot * num_heads,
        transcendentals=bp * C * num_heads,
        bytes_accessed=4 * (bp * C * H + H * d_tot + bp * dim_v + num_heads * bp * C),
    )

    o, a = pl.pallas_call(
        kernel,
        out_shape=(
            jax.ShapeDtypeStruct((bp, dim_v), jnp.float32),
            jax.ShapeDtypeStruct((num_heads, bp * C), jnp.float32),
        ),
        grid=(n_blocks,),
        in_specs=[
            pl.BlockSpec((tb * C, H), lambda i: (i, 0)),            # X rows (tb batches)
            pl.BlockSpec((1, d_tot), lambda i: (0, 0)),             # S (zero-padded)
            pl.BlockSpec((H, d_tot), lambda i: (0, 0)),             # [Wk | Wv]
            pl.BlockSpec((1, d_tot), lambda i: (0, 0)),             # [bk | bv]
            pl.BlockSpec((d_tot, num_heads), lambda i: (0, 0)),     # Ek selector
            pl.BlockSpec((num_heads, d_tot), lambda i: (0, 0)),     # Ev selector
        ],
        out_specs=(
            pl.BlockSpec((tb, dim_v), lambda i: (i, 0)),            # O rows
            pl.BlockSpec((num_heads, tb * C), lambda i: (0, i)),    # A lane-dense slab
        ),
        compiler_params=pltpu.CompilerParams(
            dimension_semantics=("parallel",),
            vmem_limit_bytes=32 * 1024 * 1024),
        cost_estimate=cost,
    )(x2d, s_pad, w_kv, b_kv, ek, ev)

    # Back to the PyTorch layout: O (B, 1, dim_v); A (num_heads*B, 1, C), head-major.
    O = o[:B].reshape(B, 1, dim_v)
    A = a.reshape(num_heads, bp, C)[:, :B, :].reshape(num_heads * B, 1, C)
    return O, A


def ref_forward(x, S, Wk, bk, Wv, bv, num_heads):
    # pure-JAX replica of the PyTorch forward, for verification
    B, C, H = x.shape
    dim_k = Wk.shape[1]
    dim_v = Wv.shape[1]
    ds = dim_v // num_heads
    Q = jnp.broadcast_to(S[None], (B, 1, dim_k))
    K = (x.reshape(-1, H) @ Wk + bk).reshape(B, C, dim_k)
    V = (x.reshape(-1, H) @ Wv + bv).reshape(B, C, dim_v)
    Q_ = jnp.concatenate(jnp.split(Q, dim_k // ds, axis=2), axis=0)
    K_ = jnp.concatenate(jnp.split(K, dim_k // ds, axis=2), axis=0)
    V_ = jnp.concatenate(jnp.split(V, dim_v // ds, axis=2), axis=0)
    A = jax.nn.softmax(
        jnp.einsum('bqd,bkd->bqk', Q_, K_) / math.sqrt(ds), axis=2)
    O = jnp.concatenate(
        jnp.split(jnp.einsum('bqk,bkd->bqd', A, V_), num_heads, axis=0), axis=2)
    return O, A


if __name__ == "__main__":
    B, C, H = 2, 8, 32          # batch, set size, input_dim
    dim_k = dim_v = 32
    num_heads = 4

    key = jax.random.PRNGKey(0)
    kx, ks, kwk, kbk, kwv, kbv = jax.random.split(key, 6)

    x = jax.random.normal(kx, (B, C, H), dtype=jnp.float32)

    # Deterministic parameter init (shapes follow the module's __init__).
    s_bound = math.sqrt(6.0 / (1 + dim_k))                       # xavier_uniform on (1, dim_k)
    S = jax.random.uniform(ks, (1, dim_k), jnp.float32, -s_bound, s_bound)
    w_bound = 1.0 / math.sqrt(H)                                 # Linear(input_dim -> dim)
    Wk = jax.random.uniform(kwk, (H, dim_k), jnp.float32, -w_bound, w_bound)
    bk = jax.random.uniform(kbk, (1, dim_k), jnp.float32, -w_bound, w_bound)
    Wv = jax.random.uniform(kwv, (H, dim_v), jnp.float32, -w_bound, w_bound)
    bv = jax.random.uniform(kbv, (1, dim_v), jnp.float32, -w_bound, w_bound)

    O, A = pooled_attention(x, S, Wk, bk, Wv, bv, num_heads)
    O, A = jax.block_until_ready((O, A))

    O_ref, A_ref = ref_forward(x, S, Wk, bk, Wv, bv, num_heads)
    np.testing.assert_allclose(np.asarray(O), np.asarray(O_ref), rtol=1e-5, atol=1e-5)
    np.testing.assert_allclose(np.asarray(A), np.asarray(A_ref), rtol=1e-5, atol=1e-5)

    print("KERNEL_OK")
</pallas_src>

<mosaic_0001>
module attributes {stable_mosaic.version = 11 : i64} {
  func.func @pooled_attention_kernel(%arg0: i32, %arg1: memref<256x32xf32, #tpu.memory_space<vmem>>, %arg2: memref<1x64xf32, #tpu.memory_space<vmem>>, %arg3: memref<32x64xf32, #tpu.memory_space<vmem>>, %arg4: memref<1x64xf32, #tpu.memory_space<vmem>>, %arg5: memref<64x4xf32, #tpu.memory_space<vmem>>, %arg6: memref<4x64xf32, #tpu.memory_space<vmem>>, %arg7: memref<32x32xf32, #tpu.memory_space<vmem>>, %arg8: memref<4x256xf32, #tpu.memory_space<vmem>>) attributes {dimension_semantics = [#tpu.dimension_semantics<parallel>], iteration_bounds = array<i64: 1>, scalar_prefetch = 0 : i64, scratch_operands = 0 : i64, tpu.core_type = #tpu.core_type<tc>, window_params = [{transform_indices = @transform_0, window_bounds = array<i64: 256, 32>}, {pipeline_mode = #tpu.pipeline_mode<synchronous>, transform_indices = @transform_1, window_bounds = array<i64: 1, 64>}, {pipeline_mode = #tpu.pipeline_mode<synchronous>, transform_indices = @transform_2, window_bounds = array<i64: 32, 64>}, {pipeline_mode = #tpu.pipeline_mode<synchronous>, transform_indices = @transform_3, window_bounds = array<i64: 1, 64>}, {pipeline_mode = #tpu.pipeline_mode<synchronous>, transform_indices = @transform_4, window_bounds = array<i64: 64, 4>}, {pipeline_mode = #tpu.pipeline_mode<synchronous>, transform_indices = @transform_5, window_bounds = array<i64: 4, 64>}, {transform_indices = @transform_6, window_bounds = array<i64: 32, 32>}, {transform_indices = @transform_7, window_bounds = array<i64: 4, 256>}]} {
    %c0 = arith.constant 0 : index
    %c0_0 = arith.constant 0 : index
    %0 = vector.load %arg1[%c0, %c0_0] : memref<256x32xf32, #tpu.memory_space<vmem>>, vector<256x32xf32>
    %c0_1 = arith.constant 0 : index
    %c0_2 = arith.constant 0 : index
    %1 = vector.load %arg3[%c0_1, %c0_2] : memref<32x64xf32, #tpu.memory_space<vmem>>, vector<32x64xf32>
    %cst = arith.constant dense<0.000000e+00> : vector<256x64xf32>
    %2 = tpu.matmul %0, %1, %cst {dimension_numbers = #tpu.dot_dimension_numbers<[1], [0], [0], [1], [0, 0, 1, 1], [], []>} : vector<256x32xf32>, vector<32x64xf32>, vector<256x64xf32> -> vector<256x64xf32>
    %c0_3 = arith.constant 0 : index
    %c0_4 = arith.constant 0 : index
    %3 = vector.load %arg4[%c0_3, %c0_4] : memref<1x64xf32, #tpu.memory_space<vmem>>, vector<1x64xf32>
    %4 = vector.broadcast %3 : vector<1x64xf32> to vector<256x64xf32>
    %5 = arith.addf %2, %4 : vector<256x64xf32>
    %c0_5 = arith.constant 0 : index
    %c0_6 = arith.constant 0 : index
    %6 = vector.load %arg2[%c0_5, %c0_6] : memref<1x64xf32, #tpu.memory_space<vmem>>, vector<1x64xf32>
    %7 = vector.broadcast %6 : vector<1x64xf32> to vector<256x64xf32>
    %8 = arith.mulf %5, %7 : vector<256x64xf32>
    %c0_7 = arith.constant 0 : index
    %c0_8 = arith.constant 0 : index
    %9 = vector.load %arg5[%c0_7, %c0_8] : memref<64x4xf32, #tpu.memory_space<vmem>>, vector<64x4xf32>
    %cst_9 = arith.constant dense<0.000000e+00> : vector<256x4xf32>
    %10 = tpu.matmul %8, %9, %cst_9 {dimension_numbers = #tpu.dot_dimension_numbers<[1], [0], [0], [1], [0, 0, 1, 1], [], []>} : vector<256x64xf32>, vector<64x4xf32>, vector<256x4xf32> -> vector<256x4xf32>
    %11 = vector.shape_cast %10 : vector<256x4xf32> to vector<32x8x4xf32>
    %cst_10 = arith.constant dense<0xFF800000> : vector<32x4xf32>
    %12 = vector.multi_reduction <maximumf>, %11, %cst_10 [1] : vector<32x8x4xf32> to vector<32x4xf32>
    %13 = vector.shape_cast %12 : vector<32x4xf32> to vector<32x1x4xf32>
    %14 = vector.broadcast %13 : vector<32x1x4xf32> to vector<32x8x4xf32>
    %15 = arith.subf %11, %14 : vector<32x8x4xf32>
    %16 = math.exp %15 : vector<32x8x4xf32>
    %cst_11 = arith.constant dense<0.000000e+00> : vector<32x4xf32>
    %17 = vector.multi_reduction <add>, %16, %cst_11 [1] : vector<32x8x4xf32> to vector<32x4xf32>
    %18 = vector.shape_cast %17 : vector<32x4xf32> to vector<32x1x4xf32>
    %19 = vector.broadcast %18 : vector<32x1x4xf32> to vector<32x8x4xf32>
    %20 = arith.divf %16, %19 : vector<32x8x4xf32>
    %21 = vector.shape_cast %20 : vector<32x8x4xf32> to vector<256x4xf32>
    %c0_12 = arith.constant 0 : index
    %c0_13 = arith.constant 0 : index
    %22 = vector.load %arg6[%c0_12, %c0_13] : memref<4x64xf32, #tpu.memory_space<vmem>>, vector<4x64xf32>
    %cst_14 = arith.constant dense<0.000000e+00> : vector<256x64xf32>
    %23 = tpu.matmul %21, %22, %cst_14 {dimension_numbers = #tpu.dot_dimension_numbers<[1], [0], [0], [1], [0, 0, 1, 1], [], []>} : vector<256x4xf32>, vector<4x64xf32>, vector<256x64xf32> -> vector<256x64xf32>
    %24 = arith.mulf %23, %5 : vector<256x64xf32>
    %25 = vector.shape_cast %24 : vector<256x64xf32> to vector<32x8x64xf32>
    %cst_15 = arith.constant dense<0.000000e+00> : vector<32x64xf32>
    %26 = vector.multi_reduction <add>, %25, %cst_15 [1] : vector<32x8x64xf32> to vector<32x64xf32>
    %27 = vector.extract_strided_slice %26 {offsets = [0, 32], sizes = [32, 32], strides = [1, 1]} : vector<32x64xf32> to vector<32x32xf32>
    %c0_16 = arith.constant 0 : index
    %c0_17 = arith.constant 0 : index
    %28 = vector.load %arg7[%c0_16, %c0_17] : memref<32x32xf32, #tpu.memory_space<vmem>>, vector<32x32xf32>
    tpu.vector_store %arg7[%c0_16, %c0_17], %27 {strides = array<i32>} : memref<32x32xf32, #tpu.memory_space<vmem>>, vector<32x32xf32>,
    %29 = tpu.iota {dimensions = array<i32: 0>} : vector<4x4xi32>
    %30 = tpu.iota {dimensions = array<i32: 1>} : vector<4x4xi32>
    %31 = arith.cmpi eq, %29, %30 : vector<4x4xi32>
    %32 = arith.extui %31 : vector<4x4xi1> to vector<4x4xi32>
    %33 = arith.sitofp %32 : vector<4x4xi32> to vector<4x4xf32>
    %cst_18 = arith.constant dense<0.000000e+00> : vector<4x256xf32>
    %34 = tpu.matmul %33, %21, %cst_18 {dimension_numbers = #tpu.dot_dimension_numbers<[1], [1], [0], [0], [0, 0, 1, 0], [], []>} : vector<4x4xf32>, vector<256x4xf32>, vector<4x256xf32> -> vector<4x256xf32>
    %c0_19 = arith.constant 0 : index
    %c0_20 = arith.constant 0 : index
    %35 = vector.load %arg8[%c0_19, %c0_20] : memref<4x256xf32, #tpu.memory_space<vmem>>, vector<4x256xf32>
    tpu.vector_store %arg8[%c0_19, %c0_20], %34 {strides = array<i32>} : memref<4x256xf32, #tpu.memory_space<vmem>>, vector<4x256xf32>,
    return
  }
  func.func @transform_0(%arg0: i32) -> (i32, i32) {
    %c0_i32 = arith.constant 0 : i32
    %c0_i32_0 = arith.constant 0 : i32
    return %arg0, %c0_i32 : i32, i32
  }
  func.func @transform_1(%arg0: i32) -> (i32, i32) {
    %c0_i32 = arith.constant 0 : i32
    %c0_i32_0 = arith.constant 0 : i32
    %c0_i32_1 = arith.constant 0 : i32
    return %c0_i32, %c0_i32_0 : i32, i32
  }
  func.func @transform_2(%arg0: i32) -> (i32, i32) {
    %c0_i32 = arith.constant 0 : i32
    %c0_i32_0 = arith.constant 0 : i32
    %c0_i32_1 = arith.constant 0 : i32
    return %c0_i32, %c0_i32_0 : i32, i32
  }
  func.func @transform_3(%arg0: i32) -> (i32, i32) {
    %c0_i32 = arith.constant 0 : i32
    %c0_i32_0 = arith.constant 0 : i32
    %c0_i32_1 = arith.constant 0 : i32
    return %c0_i32, %c0_i32_0 : i32, i32
  }
  func.func @transform_4(%arg0: i32) -> (i32, i32) {
    %c0_i32 = arith.constant 0 : i32
    %c0_i32_0 = arith.constant 0 : i32
    %c0_i32_1 = arith.constant 0 : i32
    return %c0_i32, %c0_i32_0 : i32, i32
  }
  func.func @transform_5(%arg0: i32) -> (i32, i32) {
    %c0_i32 = arith.constant 0 : i32
    %c0_i32_0 = arith.constant 0 : i32
    %c0_i32_1 = arith.constant 0 : i32
    return %c0_i32, %c0_i32_0 : i32, i32
  }
  func.func @transform_6(%arg0: i32) -> (i32, i32) {
    %c0_i32 = arith.constant 0 : i32
    %c0_i32_0 = arith.constant 0 : i32
    return %arg0, %c0_i32 : i32, i32
  }
  func.func @transform_7(%arg0: i32) -> (i32, i32) {
    %c0_i32 = arith.constant 0 : i32
    %c0_i32_0 = arith.constant 0 : i32
    return %c0_i32, %arg0 : i32, i32
  }
}

</mosaic_0001>

<llo_original>
// kernel: tpu_custom_call.1
$region0: #{tpu_custom_call.1}
  #allocation0 [shape = 'u32[]', space=smem, size = 0x4, offset = 0x4, fixed_abs, tag = 'smem constant byte address 0x4 - core index']
  #allocation1 [shape = 'u32[72,128]{1,0:T(1,128)}', space=vmem, size = 0x9000, scoped, tag = 'internal scratch']
  %s0 = inlined_call_operand.vmem [shape: f32[256,32], index: 0, kind: input, shape index: {}]
  %s1 = inlined_call_operand.vmem [shape: f32[1,64], index: 1, kind: input, shape index: {}]
  %s2 = inlined_call_operand.vmem [shape: f32[32,64], index: 2, kind: input, shape index: {}]
  %s3 = inlined_call_operand.vmem [shape: f32[1,64], index: 3, kind: input, shape index: {}]
  %s4 = inlined_call_operand.vmem [shape: f32[64,4], index: 4, kind: input, shape index: {}]
  %s5 = inlined_call_operand.vmem [shape: f32[4,64], index: 5, kind: input, shape index: {}]
  %s6 = inlined_call_operand.hbm [shape: f32[32,32], index: 6, kind: output, shape index: {0}]
  %s7 = inlined_call_operand.hbm [shape: f32[4,256], index: 7, kind: output, shape index: {1}]
  %8 = xla_tuple %s6, %s7
  %s9 = sld [smem:[#allocation0]]
  $region42: #{tpu_custom_call.1} parent=0
    _
  %s11 = ssub.s32 1, %s9
  %s12 = scalar_select 0, %s11, %s9
  $region1: #{tpu_custom_call.1} parent=0
    #allocation2 [shape = 'u8[16384]{0}', space=vmem, size = 0x4000, scoped, tag = 'output window, operand 0, single buffered']
    #allocation3 [shape = 's32[1]{0}', space=sflag, size = 0x4, scoped, tag = 'scoped memory for tpu_custom_call.1']
    #allocation4 [shape = 'u8[4096]{0}', space=vmem, size = 0x1000, scoped, tag = 'output window, operand 1, single buffered']
    #allocation5 [shape = 's32[1]{0}', space=sflag, size = 0x4, scoped, tag = 'scoped memory for tpu_custom_call.1']
    %13 = vsyncpa [#allocation3], 0
    %14 = vsyncpa [#allocation5], 0
    // Predicated region
    $region2: #{tpu_custom_call.1} parent=1 // pred_check
      _
    $region3: #{tpu_custom_call.1} parent=1 // pred_check_branch
      %16 = sbr.rel (0) target = $region5
    $region4: #{tpu_custom_call.1} parent=1 // pred_region
      _
    $region5: #{tpu_custom_call.1} parent=1 // pred_fallthru
      _
    // Predicated region
    $region6: #{tpu_custom_call.1} parent=1 // pred_check
      _
    $region7: #{tpu_custom_call.1} parent=1 // pred_check_branch
      %18 = sbr.rel (0) target = $region9
    $region8: #{tpu_custom_call.1} parent=1 // pred_region
      _
    $region9: #{tpu_custom_call.1} parent=1 // pred_fallthru
      _
    // Predicated region
    $region10: #{tpu_custom_call.1} parent=1 // pred_check
      _
    $region11: #{tpu_custom_call.1} parent=1 // pred_check_branch
      %20 = sbr.rel (0) target = $region13
    $region12: #{tpu_custom_call.1} parent=1 // pred_region
      _
    $region13: #{tpu_custom_call.1} parent=1 // pred_fallthru
      _
    // Predicated region
    $region14: #{tpu_custom_call.1} parent=1 // pred_check
      _
    $region15: #{tpu_custom_call.1} parent=1 // pred_check_branch
      %22 = sbr.rel (0) target = $region17
    $region16: #{tpu_custom_call.1} parent=1 // pred_region
      _
    $region17: #{tpu_custom_call.1} parent=1 // pred_fallthru
      _
    // Predicated region
    $region18: #{tpu_custom_call.1} parent=1 // pred_check
      _
    $region19: #{tpu_custom_call.1} parent=1 // pred_check_branch
      %24 = sbr.rel (0) target = $region21
    $region20: #{tpu_custom_call.1} parent=1 // pred_region
      _
    $region21: #{tpu_custom_call.1} parent=1 // pred_fallthru
      _
    // Predicated region
    $region22: #{tpu_custom_call.1} parent=1 // pred_check
      _
    $region23: #{tpu_custom_call.1} parent=1 // pred_check_branch
      %26 = sbr.rel (0) target = $region25
    $region24: #{tpu_custom_call.1} parent=1 // pred_region
      _
    $region25: #{tpu_custom_call.1} parent=1 // pred_fallthru
      _
    %v27 = vld [vmem:[%s0] sm:$0xff]
    %v28 = vld [vmem:[%s0 + $0x8] sm:$0xff]
    %v29 = vld [vmem:[%s0 + $0x10] sm:$0xff]
    %v30 = vld [vmem:[%s0 + $0x18] sm:$0xff]
    %v31 = vld [vmem:[%s0 + $0x20] sm:$0xff]
    %v32 = vld [vmem:[%s0 + $0x28] sm:$0xff]
    %v33 = vld [vmem:[%s0 + $0x30] sm:$0xff]
    %v34 = vld [vmem:[%s0 + $0x38] sm:$0xff]
    %v35 = vld [vmem:[%s0 + $0x40] sm:$0xff]
    %v36 = vld [vmem:[%s0 + $0x48] sm:$0xff]
    %v37 = vld [vmem:[%s0 + $0x50] sm:$0xff]
    %v38 = vld [vmem:[%s0 + $0x58] sm:$0xff]
    %v39 = vld [vmem:[%s0 + $0x60] sm:$0xff]
    %v40 = vld [vmem:[%s0 + $0x68] sm:$0xff]
    %v41 = vld [vmem:[%s0 + $0x70] sm:$0xff]
    %v42 = vld [vmem:[%s0 + $0x78] sm:$0xff]
    %v43 = vld [vmem:[%s0 + $0x80] sm:$0xff]
    %v44 = vld [vmem:[%s0 + $0x88] sm:$0xff]
    %v45 = vld [vmem:[%s0 + $0x90] sm:$0xff]
    %v46 = vld [vmem:[%s0 + $0x98] sm:$0xff]
    %v47 = vld [vmem:[%s0 + $0xa0] sm:$0xff]
    %v48 = vld [vmem:[%s0 + $0xa8] sm:$0xff]
    %v49 = vld [vmem:[%s0 + $0xb0] sm:$0xff]
    %v50 = vld [vmem:[%s0 + $0xb8] sm:$0xff]
    %v51 = vld [vmem:[%s0 + $0xc0] sm:$0xff]
    %v52 = vld [vmem:[%s0 + $0xc8] sm:$0xff]
    %v53 = vld [vmem:[%s0 + $0xd0] sm:$0xff]
    %v54 = vld [vmem:[%s0 + $0xd8] sm:$0xff]
    %v55 = vld [vmem:[%s0 + $0xe0] sm:$0xff]
    %v56 = vld [vmem:[%s0 + $0xe8] sm:$0xff]
    %v57 = vld [vmem:[%s0 + $0xf0] sm:$0xff]
    %v58 = vld [vmem:[%s0 + $0xf8] sm:$0xff]
    %v59 = vld [vmem:[%s2] sm:$0xff]
    %v60 = vld [vmem:[%s2 + $0x8] sm:$0xff]
    %v61 = vld [vmem:[%s2 + $0x10] sm:$0xff]
    %v62 = vld [vmem:[%s2 + $0x18] sm:$0xff]
    %v63 = vld [vmem:[%s3] sm:$0x1]
    %v65 = vperm.slane %v63, 0
    %vm67 = vcmask 261120
    %v69 = vsel %vm67, %v27, 0
    %v72 = vsel %vm67, %v28, 0
    %v75 = vsel %vm67, %v29, 0
    %v78 = vsel %vm67, %v30, 0
    %v81 = vsel %vm67, %v31, 0
    %v84 = vsel %vm67, %v32, 0
    %v87 = vsel %vm67, %v33, 0
    %v90 = vsel %vm67, %v34, 0
    %v93 = vsel %vm67, %v35, 0
    %v96 = vsel %vm67, %v36, 0
    %v99 = vsel %vm67, %v37, 0
    %v102 = vsel %vm67, %v38, 0
    %v105 = vsel %vm67, %v39, 0
    %v108 = vsel %vm67, %v40, 0
    %v111 = vsel %vm67, %v41, 0
    %v114 = vsel %vm67, %v42, 0
    %v117 = vsel %vm67, %v43, 0
    %v120 = vsel %vm67, %v44, 0
    %v123 = vsel %vm67, %v45, 0
    %v126 = vsel %vm67, %v46, 0
    %v129 = vsel %vm67, %v47, 0
    %v132 = vsel %vm67, %v48, 0
    %v135 = vsel %vm67, %v49, 0
    %v138 = vsel %vm67, %v50, 0
    %v141 = vsel %vm67, %v51, 0
    %v144 = vsel %vm67, %v52, 0
    %v147 = vsel %vm67, %v53, 0
    %v150 = vsel %vm67, %v54, 0
    %v153 = vsel %vm67, %v55, 0
    %v156 = vsel %vm67, %v56, 0
    %v159 = vsel %vm67, %v57, 0
    %v162 = vsel %vm67, %v58, 0
    %164 = vmatpush.msra.mxu0 0.0
    %165 = vmatpush.msra.mxu0 0.0
    %166 = vmatpush.msra.mxu0 0.0
    %167 = vmatpush.msra.mxu0 0.0
    %168 = vmatpush.msra.mxu0 0.0
    %169 = vmatpush.msra.mxu0 0.0
    %170 = vmatpush.msra.mxu0 0.0
    %171 = vmatpush.msra.mxu0 0.0
    %172 = vmatpush.msra.mxu0 0.0
    %173 = vmatpush.msra.mxu0 0.0
    %174 = vmatpush.msra.mxu0 0.0
    %175 = vmatpush.msra.mxu0 0.0
    %176 = vmatpush.msra.mxu0 %v62
    %177 = vmatpush.msra.mxu0 %v61
    %178 = vmatpush.msra.mxu0 %v60
    %179 = vmatpush.msra.mxu0 %v59
    %180 = vmatmul.f32.gmra.mxu0 %v69
    %v181 = vpop.f32.mrf.mxu0
    %v182 = vadd.f32 %v65, %v181
    %183 = vmatmul.f32.gmra.mxu0 %v72
    %v184 = vpop.f32.mrf.mxu0
    %v185 = vadd.f32 %v65, %v184
    %186 = vmatmul.f32.gmra.mxu0 %v75
    %v187 = vpop.f32.mrf.mxu0
    %v188 = vadd.f32 %v65, %v187
    %189 = vmatmul.f32.gmra.mxu0 %v78
    %v190 = vpop.f32.mrf.mxu0
    %v191 = vadd.f32 %v65, %v190
    %192 = vmatmul.f32.gmra.mxu0 %v81
    %v193 = vpop.f32.mrf.mxu0
    %v194 = vadd.f32 %v65, %v193
    %195 = vmatmul.f32.gmra.mxu0 %v84
    %v196 = vpop.f32.mrf.mxu0
    %v197 = vadd.f32 %v65, %v196
    %198 = vmatmul.f32.gmra.mxu0 %v87
    %v199 = vpop.f32.mrf.mxu0
    %v200 = vadd.f32 %v65, %v199
    %201 = vmatmul.f32.gmra.mxu0 %v90
    %v202 = vpop.f32.mrf.mxu0
    %v203 = vadd.f32 %v65, %v202
    %204 = vmatmul.f32.gmra.mxu0 %v93
    %v205 = vpop.f32.mrf.mxu0
    %v206 = vadd.f32 %v65, %v205
    %207 = vmatmul.f32.gmra.mxu0 %v96
    %v208 = vpop.f32.mrf.mxu0
    %v209 = vadd.f32 %v65, %v208
    %210 = vmatmul.f32.gmra.mxu0 %v99
    %v211 = vpop.f32.mrf.mxu0
    %v212 = vadd.f32 %v65, %v211
    %213 = vmatmul.f32.gmra.mxu0 %v102
    %v214 = vpop.f32.mrf.mxu0
    %v215 = vadd.f32 %v65, %v214
    %216 = vmatmul.f32.gmra.mxu0 %v105
    %v217 = vpop.f32.mrf.mxu0
    %v218 = vadd.f32 %v65, %v217
    %219 = vmatmul.f32.gmra.mxu0 %v108
    %v220 = vpop.f32.mrf.mxu0
    %v221 = vadd.f32 %v65, %v220
    %222 = vmatmul.f32.gmra.mxu0 %v111
    %v223 = vpop.f32.mrf.mxu0
    %v224 = vadd.f32 %v65, %v223
    %225 = vmatmul.f32.gmra.mxu0 %v114
    %v226 = vpop.f32.mrf.mxu0
    %v227 = vadd.f32 %v65, %v226
    %228 = vmatmul.f32.gmra.mxu0 %v117
    %v229 = vpop.f32.mrf.mxu0
    %v230 = vadd.f32 %v65, %v229
    %231 = vmatmul.f32.gmra.mxu0 %v120
    %v232 = vpop.f32.mrf.mxu0
    %v233 = vadd.f32 %v65, %v232
    %234 = vmatmul.f32.gmra.mxu0 %v123
    %v235 = vpop.f32.mrf.mxu0
    %v236 = vadd.f32 %v65, %v235
    %237 = vmatmul.f32.gmra.mxu0 %v126
    %v238 = vpop.f32.mrf.mxu0
    %v239 = vadd.f32 %v65, %v238
    %240 = vmatmul.f32.gmra.mxu0 %v129
    %v241 = vpop.f32.mrf.mxu0
    %v242 = vadd.f32 %v65, %v241
    %243 = vmatmul.f32.gmra.mxu0 %v132
    %v244 = vpop.f32.mrf.mxu0
    %v245 = vadd.f32 %v65, %v244
    %246 = vmatmul.f32.gmra.mxu0 %v135
    %v247 = vpop.f32.mrf.mxu0
    %v248 = vadd.f32 %v65, %v247
    %249 = vmatmul.f32.gmra.mxu0 %v138
    %v250 = vpop.f32.mrf.mxu0
    %v251 = vadd.f32 %v65, %v250
    %252 = vmatmul.f32.gmra.mxu0 %v141
    %v253 = vpop.f32.mrf.mxu0
    %v254 = vadd.f32 %v65, %v253
    %255 = vmatmul.f32.gmra.mxu0 %v144
    %v256 = vpop.f32.mrf.mxu0
    %v257 = vadd.f32 %v65, %v256
    %258 = vmatmul.f32.gmra.mxu0 %v147
    %v259 = vpop.f32.mrf.mxu0
    %v260 = vadd.f32 %v65, %v259
    %261 = vmatmul.f32.gmra.mxu0 %v150
    %v262 = vpop.f32.mrf.mxu0
    %v263 = vadd.f32 %v65, %v262
    %264 = vmatmul.f32.gmra.mxu0 %v153
    %v265 = vpop.f32.mrf.mxu0
    %v266 = vadd.f32 %v65, %v265
    %267 = vmatmul.f32.gmra.mxu0 %v156
    %v268 = vpop.f32.mrf.mxu0
    %v269 = vadd.f32 %v65, %v268
    %270 = vmatmul.f32.gmra.mxu0 %v159
    %v271 = vpop.f32.mrf.mxu0
    %v272 = vadd.f32 %v65, %v271
    %273 = vmatmul.f32.gmra.mxu0 %v162
    %v274 = vpop.f32.mrf.mxu0
    %v275 = vadd.f32 %v65, %v274
    %276 = vdwg.mxu0
    %v277 = vld [vmem:[%s1] sm:$0x1]
    %v279 = vperm.slane %v277, 0
    %v281 = vmul.f32 %v182, %v279
    %v282 = vmul.f32 %v185, %v279
    %v283 = vmul.f32 %v188, %v279
    %v284 = vmul.f32 %v191, %v279
    %v285 = vmul.f32 %v194, %v279
    %v286 = vmul.f32 %v197, %v279
    %v287 = vmul.f32 %v200, %v279
    %v288 = vmul.f32 %v203, %v279
    %v289 = vmul.f32 %v206, %v279
    %v290 = vmul.f32 %v209, %v279
    %v291 = vmul.f32 %v212, %v279
    %v292 = vmul.f32 %v215, %v279
    %v293 = vmul.f32 %v218, %v279
    %v294 = vmul.f32 %v221, %v279
    %v295 = vmul.f32 %v224, %v279
    %v296 = vmul.f32 %v227, %v279
    %v297 = vmul.f32 %v230, %v279
    %v298 = vmul.f32 %v233, %v279
    %v299 = vmul.f32 %v236, %v279
    %v300 = vmul.f32 %v239, %v279
    %v301 = vmul.f32 %v242, %v279
    %v302 = vmul.f32 %v245, %v279
    %v303 = vmul.f32 %v248, %v279
    %v304 = vmul.f32 %v251, %v279
    %v305 = vmul.f32 %v254, %v279
    %v306 = vmul.f32 %v257, %v279
    %v307 = vmul.f32 %v260, %v279
    %v308 = vmul.f32 %v263, %v279
    %v309 = vmul.f32 %v266, %v279
    %v310 = vmul.f32 %v269, %v279
    %v311 = vmul.f32 %v272, %v279
    %v312 = vmul.f32 %v275, %v279
    %v313 = vld [vmem:[%s4] sm:$0xff]
    %v314 = vld [vmem:[%s4 + $0x8] sm:$0xff]
    %v315 = vld [vmem:[%s4 + $0x10] sm:$0xff]
    %v316 = vld [vmem:[%s4 + $0x18] sm:$0xff]
    %v317 = vld [vmem:[%s4 + $0x20] sm:$0xff]
    %v318 = vld [vmem:[%s4 + $0x28] sm:$0xff]
    %v319 = vld [vmem:[%s4 + $0x30] sm:$0xff]
    %v320 = vld [vmem:[%s4 + $0x38] sm:$0xff]
    %vm321 = vcmask 523264
    %v323 = vsel %vm321, %v281, 0
    %v326 = vsel %vm321, %v282, 0
    %v329 = vsel %vm321, %v283, 0
    %v332 = vsel %vm321, %v284, 0
    %v335 = vsel %vm321, %v285, 0
    %v338 = vsel %vm321, %v286, 0
    %v341 = vsel %vm321, %v287, 0
    %v344 = vsel %vm321, %v288, 0
    %v347 = vsel %vm321, %v289, 0
    %v350 = vsel %vm321, %v290, 0
    %v353 = vsel %vm321, %v291, 0
    %v356 = vsel %vm321, %v292, 0
    %v359 = vsel %vm321, %v293, 0
    %v362 = vsel %vm321, %v294, 0
    %v365 = vsel %vm321, %v295, 0
    %v368 = vsel %vm321, %v296, 0
    %v371 = vsel %vm321, %v297, 0
    %v374 = vsel %vm321, %v298, 0
    %v377 = vsel %vm321, %v299, 0
    %v380 = vsel %vm321, %v300, 0
    %v383 = vsel %vm321, %v301, 0
    %v386 = vsel %vm321, %v302, 0
    %v389 = vsel %vm321, %v303, 0
    %v392 = vsel %vm321, %v304, 0
    %v395 = vsel %vm321, %v305, 0
    %v398 = vsel %vm321, %v306, 0
    %v401 = vsel %vm321, %v307, 0
    %v404 = vsel %vm321, %v308, 0
    %v407 = vsel %vm321, %v309, 0
    %v410 = vsel %vm321, %v310, 0
    %v413 = vsel %vm321, %v311, 0
    %v416 = vsel %vm321, %v312, 0
    %418 = vmatpush.msra.mxu0 0.0
    %419 = vmatpush.msra.mxu0 0.0
    %420 = vmatpush.msra.mxu0 0.0
    %421 = vmatpush.msra.mxu0 0.0
    %422 = vmatpush.msra.mxu0 0.0
    %423 = vmatpush.msra.mxu0 0.0
    %424 = vmatpush.msra.mxu0 0.0
    %425 = vmatpush.msra.mxu0 0.0
    %426 = vmatpush.msra.mxu0 %v320
    %427 = vmatpush.msra.mxu0 %v319
    %428 = vmatpush.msra.mxu0 %v318
    %429 = vmatpush.msra.mxu0 %v317
    %430 = vmatpush.msra.mxu0 %v316
    %431 = vmatpush.msra.mxu0 %v315
    %432 = vmatpush.msra.mxu0 %v314
    %433 = vmatpush.msra.mxu0 %v313
    %434 = vmatmul.f32.gmra.mxu0 %v323
    %v435 = vpop.f32.mrf.mxu0
    %v436 = vadd.f32 0.0, %v435
    %437 = vmatmul.f32.gmra.mxu0 %v326
    %v438 = vpop.f32.mrf.mxu0
    %v439 = vadd.f32 0.0, %v438
    %440 = vmatmul.f32.gmra.mxu0 %v329
    %v441 = vpop.f32.mrf.mxu0
    %v442 = vadd.f32 0.0, %v441
    %443 = vmatmul.f32.gmra.mxu0 %v332
    %v444 = vpop.f32.mrf.mxu0
    %v445 = vadd.f32 0.0, %v444
    %446 = vmatmul.f32.gmra.mxu0 %v335
    %v447 = vpop.f32.mrf.mxu0
    %v448 = vadd.f32 0.0, %v447
    %449 = vmatmul.f32.gmra.mxu0 %v338
    %v450 = vpop.f32.mrf.mxu0
    %v451 = vadd.f32 0.0, %v450
    %452 = vmatmul.f32.gmra.mxu0 %v341
    %v453 = vpop.f32.mrf.mxu0
    %v454 = vadd.f32 0.0, %v453
    %455 = vmatmul.f32.gmra.mxu0 %v344
    %v456 = vpop.f32.mrf.mxu0
    %v457 = vadd.f32 0.0, %v456
    %458 = vmatmul.f32.gmra.mxu0 %v347
    %v459 = vpop.f32.mrf.mxu0
    %v460 = vadd.f32 0.0, %v459
    %461 = vmatmul.f32.gmra.mxu0 %v350
    %v462 = vpop.f32.mrf.mxu0
    %v463 = vadd.f32 0.0, %v462
    %464 = vmatmul.f32.gmra.mxu0 %v353
    %v465 = vpop.f32.mrf.mxu0
    %v466 = vadd.f32 0.0, %v465
    %467 = vmatmul.f32.gmra.mxu0 %v356
    %v468 = vpop.f32.mrf.mxu0
    %v469 = vadd.f32 0.0, %v468
    %470 = vmatmul.f32.gmra.mxu0 %v359
    %v471 = vpop.f32.mrf.mxu0
    %v472 = vadd.f32 0.0, %v471
    %473 = vmatmul.f32.gmra.mxu0 %v362
    %v474 = vpop.f32.mrf.mxu0
    %v475 = vadd.f32 0.0, %v474
    %476 = vmatmul.f32.gmra.mxu0 %v365
    %v477 = vpop.f32.mrf.mxu0
    %v478 = vadd.f32 0.0, %v477
    %479 = vmatmul.f32.gmra.mxu0 %v368
    %v480 = vpop.f32.mrf.mxu0
    %v481 = vadd.f32 0.0, %v480
    %482 = vmatmul.f32.gmra.mxu0 %v371
    %v483 = vpop.f32.mrf.mxu0
    %v484 = vadd.f32 0.0, %v483
    %485 = vmatmul.f32.gmra.mxu0 %v374
    %v486 = vpop.f32.mrf.mxu0
    %v487 = vadd.f32 0.0, %v486
    %488 = vmatmul.f32.gmra.mxu0 %v377
    %v489 = vpop.f32.mrf.mxu0
    %v490 = vadd.f32 0.0, %v489
    %491 = vmatmul.f32.gmra.mxu0 %v380
    %v492 = vpop.f32.mrf.mxu0
    %v493 = vadd.f32 0.0, %v492
    %494 = vmatmul.f32.gmra.mxu0 %v383
    %v495 = vpop.f32.mrf.mxu0
    %v496 = vadd.f32 0.0, %v495
    %497 = vmatmul.f32.gmra.mxu0 %v386
    %v498 = vpop.f32.mrf.mxu0
    %v499 = vadd.f32 0.0, %v498
    %500 = vmatmul.f32.gmra.mxu0 %v389
    %v501 = vpop.f32.mrf.mxu0
    %v502 = vadd.f32 0.0, %v501
    %503 = vmatmul.f32.gmra.mxu0 %v392
    %v504 = vpop.f32.mrf.mxu0
    %v505 = vadd.f32 0.0, %v504
    %506 = vmatmul.f32.gmra.mxu0 %v395
    %v507 = vpop.f32.mrf.mxu0
    %v508 = vadd.f32 0.0, %v507
    %509 = vmatmul.f32.gmra.mxu0 %v398
    %v510 = vpop.f32.mrf.mxu0
    %v511 = vadd.f32 0.0, %v510
    %512 = vmatmul.f32.gmra.mxu0 %v401
    %v513 = vpop.f32.mrf.mxu0
    %v514 = vadd.f32 0.0, %v513
    %515 = vmatmul.f32.gmra.mxu0 %v404
    %v516 = vpop.f32.mrf.mxu0
    %v517 = vadd.f32 0.0, %v516
    %518 = vmatmul.f32.gmra.mxu0 %v407
    %v519 = vpop.f32.mrf.mxu0
    %v520 = vadd.f32 0.0, %v519
    %521 = vmatmul.f32.gmra.mxu0 %v410
    %v522 = vpop.f32.mrf.mxu0
    %v523 = vadd.f32 0.0, %v522
    %524 = vmatmul.f32.gmra.mxu0 %v413
    %v525 = vpop.f32.mrf.mxu0
    %v526 = vadd.f32 0.0, %v525
    %527 = vmatmul.f32.gmra.mxu0 %v416
    %v528 = vpop.f32.mrf.mxu0
    %v529 = vadd.f32 0.0, %v528
    %530 = vdwg.mxu0
    %vm531 = vcmask 31744
    %v532 = vsel %vm531, %v436, -inf
    %v533 = vrot.slane %v532, 4
    %v534 = vmax.f32 %v532, %v533
    %v535 = vrot.slane %v534, 2
    %v536 = vmax.f32 %v534, %v535
    %v537 = vrot.slane %v536, 1
    %v538 = vmax.f32 %v536, %v537
    %v539 = vsel %vm531, %v439, -inf
    %v540 = vrot.slane %v539, 4
    %v541 = vmax.f32 %v539, %v540
    %v542 = vrot.slane %v541, 2
    %v543 = vmax.f32 %v541, %v542
    %v544 = vrot.slane %v543, 1
    %v545 = vmax.f32 %v543, %v544
    %v546 = vsel %vm531, %v442, -inf
    %v547 = vrot.slane %v546, 4
    %v548 = vmax.f32 %v546, %v547
    %v549 = vrot.slane %v548, 2
    %v550 = vmax.f32 %v548, %v549
    %v551 = vrot.slane %v550, 1
    %v552 = vmax.f32 %v550, %v551
    %v553 = vsel %vm531, %v445, -inf
    %v554 = vrot.slane %v553, 4
    %v555 = vmax.f32 %v553, %v554
    %v556 = vrot.slane %v555, 2
    %v557 = vmax.f32 %v555, %v556
    %v558 = vrot.slane %v557, 1
    %v559 = vmax.f32 %v557, %v558
    %v560 = vsel %vm531, %v448, -inf
    %v561 = vrot.slane %v560, 4
    %v562 = vmax.f32 %v560, %v561
    %v563 = vrot.slane %v562, 2
    %v564 = vmax.f32 %v562, %v563
    %v565 = vrot.slane %v564, 1
    %v566 = vmax.f32 %v564, %v565
    %v567 = vsel %vm531, %v451, -inf
    %v568 = vrot.slane %v567, 4
    %v569 = vmax.f32 %v567, %v568
    %v570 = vrot.slane %v569, 2
    %v571 = vmax.f32 %v569, %v570
    %v572 = vrot.slane %v571, 1
    %v573 = vmax.f32 %v571, %v572
    %v574 = vsel %vm531, %v454, -inf
    %v575 = vrot.slane %v574, 4
    %v576 = vmax.f32 %v574, %v575
    %v577 = vrot.slane %v576, 2
    %v578 = vmax.f32 %v576, %v577
    %v579 = vrot.slane %v578, 1
    %v580 = vmax.f32 %v578, %v579
    %v581 = vsel %vm531, %v457, -inf
    %v582 = vrot.slane %v581, 4
    %v583 = vmax.f32 %v581, %v582
    %v584 = vrot.slane %v583, 2
    %v585 = vmax.f32 %v583, %v584
    %v586 = vrot.slane %v585, 1
    %v587 = vmax.f32 %v585, %v586
    %v588 = vsel %vm531, %v460, -inf
    %v589 = vrot.slane %v588, 4
    %v590 = vmax.f32 %v588, %v589
    %v591 = vrot.slane %v590, 2
    %v592 = vmax.f32 %v590, %v591
    %v593 = vrot.slane %v592, 1
    %v594 = vmax.f32 %v592, %v593
    %v595 = vsel %vm531, %v463, -inf
    %v596 = vrot.slane %v595, 4
    %v597 = vmax.f32 %v595, %v596
    %v598 = vrot.slane %v597, 2
    %v599 = vmax.f32 %v597, %v598
    %v600 = vrot.slane %v599, 1
    %v601 = vmax.f32 %v599, %v600
    %v602 = vsel %vm531, %v466, -inf
    %v603 = vrot.slane %v602, 4
    %v604 = vmax.f32 %v602, %v603
    %v605 = vrot.slane %v604, 2
    %v606 = vmax.f32 %v604, %v605
    %v607 = vrot.slane %v606, 1
    %v608 = vmax.f32 %v606, %v607
    %v609 = vsel %vm531, %v469, -inf
    %v610 = vrot.slane %v609, 4
    %v611 = vmax.f32 %v609, %v610
    %v612 = vrot.slane %v611, 2
    %v613 = vmax.f32 %v611, %v612
    %v614 = vrot.slane %v613, 1
    %v615 = vmax.f32 %v613, %v614
    %v616 = vsel %vm531, %v472, -inf
    %v617 = vrot.slane %v616, 4
    %v618 = vmax.f32 %v616, %v617
    %v619 = vrot.slane %v618, 2
    %v620 = vmax.f32 %v618, %v619
    %v621 = vrot.slane %v620, 1
    %v622 = vmax.f32 %v620, %v621
    %v623 = vsel %vm531, %v475, -inf
    %v624 = vrot.slane %v623, 4
    %v625 = vmax.f32 %v623, %v624
    %v626 = vrot.slane %v625, 2
    %v627 = vmax.f32 %v625, %v626
    %v628 = vrot.slane %v627, 1
    %v629 = vmax.f32 %v627, %v628
    %v630 = vsel %vm531, %v478, -inf
    %v631 = vrot.slane %v630, 4
    %v632 = vmax.f32 %v630, %v631
    %v633 = vrot.slane %v632, 2
    %v634 = vmax.f32 %v632, %v633
    %v635 = vrot.slane %v634, 1
    %v636 = vmax.f32 %v634, %v635
    %v637 = vsel %vm531, %v481, -inf
    %v638 = vrot.slane %v637, 4
    %v639 = vmax.f32 %v637, %v638
    %v640 = vrot.slane %v639, 2
    %v641 = vmax.f32 %v639, %v640
    %v642 = vrot.slane %v641, 1
    %v643 = vmax.f32 %v641, %v642
    %v644 = vsel %vm531, %v484, -inf
    %v645 = vrot.slane %v644, 4
    %v646 = vmax.f32 %v644, %v645
    %v647 = vrot.slane %v646, 2
    %v648 = vmax.f32 %v646, %v647
    %v649 = vrot.slane %v648, 1
    %v650 = vmax.f32 %v648, %v649
    %v651 = vsel %vm531, %v487, -inf
    %v652 = vrot.slane %v651, 4
    %v653 = vmax.f32 %v651, %v652
    %v654 = vrot.slane %v653, 2
    %v655 = vmax.f32 %v653, %v654
    %v656 = vrot.slane %v655, 1
    %v657 = vmax.f32 %v655, %v656
    %v658 = vsel %vm531, %v490, -inf
    %v659 = vrot.slane %v658, 4
    %v660 = vmax.f32 %v658, %v659
    %v661 = vrot.slane %v660, 2
    %v662 = vmax.f32 %v660, %v661
    %v663 = vrot.slane %v662, 1
    %v664 = vmax.f32 %v662, %v663
    %v665 = vsel %vm531, %v493, -inf
    %v666 = vrot.slane %v665, 4
    %v667 = vmax.f32 %v665, %v666
    %v668 = vrot.slane %v667, 2
    %v669 = vmax.f32 %v667, %v668
    %v670 = vrot.slane %v669, 1
    %v671 = vmax.f32 %v669, %v670
    %v672 = vsel %vm531, %v496, -inf
    %v673 = vrot.slane %v672, 4
    %v674 = vmax.f32 %v672, %v673
    %v675 = vrot.slane %v674, 2
    %v676 = vmax.f32 %v674, %v675
    %v677 = vrot.slane %v676, 1
    %v678 = vmax.f32 %v676, %v677
    %v679 = vsel %vm531, %v499, -inf
    %v680 = vrot.slane %v679, 4
    %v681 = vmax.f32 %v679, %v680
    %v682 = vrot.slane %v681, 2
    %v683 = vmax.f32 %v681, %v682
    %v684 = vrot.slane %v683, 1
    %v685 = vmax.f32 %v683, %v684
    %v686 = vsel %vm531, %v502, -inf
    %v687 = vrot.slane %v686, 4
    %v688 = vmax.f32 %v686, %v687
    %v689 = vrot.slane %v688, 2
    %v690 = vmax.f32 %v688, %v689
    %v691 = vrot.slane %v690, 1
    %v692 = vmax.f32 %v690, %v691
    %v693 = vsel %vm531, %v505, -inf
    %v694 = vrot.slane %v693, 4
    %v695 = vmax.f32 %v693, %v694
    %v696 = vrot.slane %v695, 2
    %v697 = vmax.f32 %v695, %v696
    %v698 = vrot.slane %v697, 1
    %v699 = vmax.f32 %v697, %v698
    %v700 = vsel %vm531, %v508, -inf
    %v701 = vrot.slane %v700, 4
    %v702 = vmax.f32 %v700, %v701
    %v703 = vrot.slane %v702, 2
    %v704 = vmax.f32 %v702, %v703
    %v705 = vrot.slane %v704, 1
    %v706 = vmax.f32 %v704, %v705
    %v707 = vsel %vm531, %v511, -inf
    %v708 = vrot.slane %v707, 4
    %v709 = vmax.f32 %v707, %v708
    %v710 = vrot.slane %v709, 2
    %v711 = vmax.f32 %v709, %v710
    %v712 = vrot.slane %v711, 1
    %v713 = vmax.f32 %v711, %v712
    %v714 = vsel %vm531, %v514, -inf
    %v715 = vrot.slane %v714, 4
    %v716 = vmax.f32 %v714, %v715
    %v717 = vrot.slane %v716, 2
    %v718 = vmax.f32 %v716, %v717
    %v719 = vrot.slane %v718, 1
    %v720 = vmax.f32 %v718, %v719
    %v721 = vsel %vm531, %v517, -inf
    %v722 = vrot.slane %v721, 4
    %v723 = vmax.f32 %v721, %v722
    %v724 = vrot.slane %v723, 2
    %v725 = vmax.f32 %v723, %v724
    %v726 = vrot.slane %v725, 1
    %v727 = vmax.f32 %v725, %v726
    %v728 = vsel %vm531, %v520, -inf
    %v729 = vrot.slane %v728, 4
    %v730 = vmax.f32 %v728, %v729
    %v731 = vrot.slane %v730, 2
    %v732 = vmax.f32 %v730, %v731
    %v733 = vrot.slane %v732, 1
    %v734 = vmax.f32 %v732, %v733
    %v735 = vsel %vm531, %v523, -inf
    %v736 = vrot.slane %v735, 4
    %v737 = vmax.f32 %v735, %v736
    %v738 = vrot.slane %v737, 2
    %v739 = vmax.f32 %v737, %v738
    %v740 = vrot.slane %v739, 1
    %v741 = vmax.f32 %v739, %v740
    %v742 = vsel %vm531, %v526, -inf
    %v743 = vrot.slane %v742, 4
    %v744 = vmax.f32 %v742, %v743
    %v745 = vrot.slane %v744, 2
    %v746 = vmax.f32 %v744, %v745
    %v747 = vrot.slane %v746, 1
    %v748 = vmax.f32 %v746, %v747
    %v749 = vsel %vm531, %v529, -inf
    %v750 = vrot.slane %v749, 4
    %v751 = vmax.f32 %v749, %v750
    %v752 = vrot.slane %v751, 2
    %v753 = vmax.f32 %v751, %v752
    %v754 = vrot.slane %v753, 1
    %v755 = vmax.f32 %v753, %v754
    %v756 = vsub.f32 %v436, %v538
    %v757 = vsub.f32 %v439, %v545
    %v758 = vsub.f32 %v442, %v552
    %v759 = vsub.f32 %v445, %v559
    %v760 = vsub.f32 %v448, %v566
    %v761 = vsub.f32 %v451, %v573
    %v762 = vsub.f32 %v454, %v580
    %v763 = vsub.f32 %v457, %v587
    %v764 = vsub.f32 %v460, %v594
    %v765 = vsub.f32 %v463, %v601
    %v766 = vsub.f32 %v466, %v608
    %v767 = vsub.f32 %v469, %v615
    %v768 = vsub.f32 %v472, %v622
    %v769 = vsub.f32 %v475, %v629
    %v770 = vsub.f32 %v478, %v636
    %v771 = vsub.f32 %v481, %v643
    %v772 = vsub.f32 %v484, %v650
    %v773 = vsub.f32 %v487, %v657
    %v774 = vsub.f32 %v490, %v664
    %v775 = vsub.f32 %v493, %v671
    %v776 = vsub.f32 %v496, %v678
    %v777 = vsub.f32 %v499, %v685
    %v778 = vsub.f32 %v502, %v692
    %v779 = vsub.f32 %v505, %v699
    %v780 = vsub.f32 %v508, %v706
    %v781 = vsub.f32 %v511, %v713
    %v782 = vsub.f32 %v514, %v720
    %v783 = vsub.f32 %v517, %v727
    %v784 = vsub.f32 %v520, %v734
    %v785 = vsub.f32 %v523, %v741
    %v786 = vsub.f32 %v526, %v748
    %v787 = vsub.f32 %v529, %v755
    %v788 = vmul.f32 %v756, 1.442695
    %v789 = vpow.pop %v788
    %v790 = vmul.f32 %v757, 1.442695
    %v791 = vpow.pop %v790
    %v792 = vmul.f32 %v758, 1.442695
    %v793 = vpow.pop %v792
    %v794 = vmul.f32 %v759, 1.442695
    %v795 = vpow.pop %v794
    %v796 = vmul.f32 %v760, 1.442695
    %v797 = vpow.pop %v796
    %v798 = vmul.f32 %v761, 1.442695
    %v799 = vpow.pop %v798
    %v800 = vmul.f32 %v762, 1.442695
    %v801 = vpow.pop %v800
    %v802 = vmul.f32 %v763, 1.442695
    %v803 = vpow.pop %v802
    %v804 = vmul.f32 %v764, 1.442695
    %v805 = vpow.pop %v804
    %v806 = vmul.f32 %v765, 1.442695
    %v807 = vpow.pop %v806
    %v808 = vmul.f32 %v766, 1.442695
    %v809 = vpow.pop %v808
    %v810 = vmul.f32 %v767, 1.442695
    %v811 = vpow.pop %v810
    %v812 = vmul.f32 %v768, 1.442695
    %v813 = vpow.pop %v812
    %v814 = vmul.f32 %v769, 1.442695
    %v815 = vpow.pop %v814
    %v816 = vmul.f32 %v770, 1.442695
    %v817 = vpow.pop %v816
    %v818 = vmul.f32 %v771, 1.442695
    %v819 = vpow.pop %v818
    %v820 = vmul.f32 %v772, 1.442695
    %v821 = vpow.pop %v820
    %v822 = vmul.f32 %v773, 1.442695
    %v823 = vpow.pop %v822
    %v824 = vmul.f32 %v774, 1.442695
    %v825 = vpow.pop %v824
    %v826 = vmul.f32 %v775, 1.442695
    %v827 = vpow.pop %v826
    %v828 = vmul.f32 %v776, 1.442695
    %v829 = vpow.pop %v828
    %v830 = vmul.f32 %v777, 1.442695
    %v831 = vpow.pop %v830
    %v832 = vmul.f32 %v778, 1.442695
    %v833 = vpow.pop %v832
    %v834 = vmul.f32 %v779, 1.442695
    %v835 = vpow.pop %v834
    %v836 = vmul.f32 %v780, 1.442695
    %v837 = vpow.pop %v836
    %v838 = vmul.f32 %v781, 1.442695
    %v839 = vpow.pop %v838
    %v840 = vmul.f32 %v782, 1.442695
    %v841 = vpow.pop %v840
    %v842 = vmul.f32 %v783, 1.442695
    %v843 = vpow.pop %v842
    %v844 = vmul.f32 %v784, 1.442695
    %v845 = vpow.pop %v844
    %v846 = vmul.f32 %v785, 1.442695
    %v847 = vpow.pop %v846
    %v848 = vmul.f32 %v786, 1.442695
    %v849 = vpow.pop %v848
    %v850 = vmul.f32 %v787, 1.442695
    %v851 = vpow.pop %v850
    %v852 = vsel %vm531, %v789, 0.0
    %v853 = vrot.slane %v852, 4
    %v854 = vadd.f32 %v852, %v853
    %v855 = vrot.slane %v854, 2
    %v856 = vadd.f32 %v854, %v855
    %v857 = vrot.slane %v856, 1
    %v858 = vadd.f32 %v856, %v857
    %v859 = vsel %vm531, %v791, 0.0
    %v860 = vrot.slane %v859, 4
    %v861 = vadd.f32 %v859, %v860
    %v862 = vrot.slane %v861, 2
    %v863 = vadd.f32 %v861, %v862
    %v864 = vrot.slane %v863, 1
    %v865 = vadd.f32 %v863, %v864
    %v866 = vsel %vm531, %v793, 0.0
    %v867 = vrot.slane %v866, 4
    %v868 = vadd.f32 %v866, %v867
    %v869 = vrot.slane %v868, 2
    %v870 = vadd.f32 %v868, %v869
    %v871 = vrot.slane %v870, 1
    %v872 = vadd.f32 %v870, %v871
    %v873 = vsel %vm531, %v795, 0.0
    %v874 = vrot.slane %v873, 4
    %v875 = vadd.f32 %v873, %v874
    %v876 = vrot.slane %v875, 2
    %v877 = vadd.f32 %v875, %v876
    %v878 = vrot.slane %v877, 1
    %v879 = vadd.f32 %v877, %v878
    %v880 = vsel %vm531, %v797, 0.0
    %v881 = vrot.slane %v880, 4
    %v882 = vadd.f32 %v880, %v881
    %v883 = vrot.slane %v882, 2
    %v884 = vadd.f32 %v882, %v883
    %v885 = vrot.slane %v884, 1
    %v886 = vadd.f32 %v884, %v885
    %v887 = vsel %vm531, %v799, 0.0
    %v888 = vrot.slane %v887, 4
    %v889 = vadd.f32 %v887, %v888
    %v890 = vrot.slane %v889, 2
    %v891 = vadd.f32 %v889, %v890
    %v892 = vrot.slane %v891, 1
    %v893 = vadd.f32 %v891, %v892
    %v894 = vsel %vm531, %v801, 0.0
    %v895 = vrot.slane %v894, 4
    %v896 = vadd.f32 %v894, %v895
    %v897 = vrot.slane %v896, 2
    %v898 = vadd.f32 %v896, %v897
    %v899 = vrot.slane %v898, 1
    %v900 = vadd.f32 %v898, %v899
    %v901 = vsel %vm531, %v803, 0.0
    %v902 = vrot.slane %v901, 4
    %v903 = vadd.f32 %v901, %v902
    %v904 = vrot.slane %v903, 2
    %v905 = vadd.f32 %v903, %v904
    %v906 = vrot.slane %v905, 1
    %v907 = vadd.f32 %v905, %v906
    %v908 = vsel %vm531, %v805, 0.0
    %v909 = vrot.slane %v908, 4
    %v910 = vadd.f32 %v908, %v909
    %v911 = vrot.slane %v910, 2
    %v912 = vadd.f32 %v910, %v911
    %v913 = vrot.slane %v912, 1
    %v914 = vadd.f32 %v912, %v913
    %v915 = vsel %vm531, %v807, 0.0
    %v916 = vrot.slane %v915, 4
    %v917 = vadd.f32 %v915, %v916
    %v918 = vrot.slane %v917, 2
    %v919 = vadd.f32 %v917, %v918
    %v920 = vrot.slane %v919, 1
    %v921 = vadd.f32 %v919, %v920
    %v922 = vsel %vm531, %v809, 0.0
    %v923 = vrot.slane %v922, 4
    %v924 = vadd.f32 %v922, %v923
    %v925 = vrot.slane %v924, 2
    %v926 = vadd.f32 %v924, %v925
    %v927 = vrot.slane %v926, 1
    %v928 = vadd.f32 %v926, %v927
    %v929 = vsel %vm531, %v811, 0.0
    %v930 = vrot.slane %v929, 4
    %v931 = vadd.f32 %v929, %v930
    %v932 = vrot.slane %v931, 2
    %v933 = vadd.f32 %v931, %v932
    %v934 = vrot.slane %v933, 1
    %v935 = vadd.f32 %v933, %v934
    %v936 = vsel %vm531, %v813, 0.0
    %v937 = vrot.slane %v936, 4
    %v938 = vadd.f32 %v936, %v937
    %v939 = vrot.slane %v938, 2
    %v940 = vadd.f32 %v938, %v939
    %v941 = vrot.slane %v940, 1
    %v942 = vadd.f32 %v940, %v941
    %v943 = vsel %vm531, %v815, 0.0
    %v944 = vrot.slane %v943, 4
    %v945 = vadd.f32 %v943, %v944
    %v946 = vrot.slane %v945, 2
    %v947 = vadd.f32 %v945, %v946
    %v948 = vrot.slane %v947, 1
    %v949 = vadd.f32 %v947, %v948
    %v950 = vsel %vm531, %v817, 0.0
    %v951 = vrot.slane %v950, 4
    %v952 = vadd.f32 %v950, %v951
    %v953 = vrot.slane %v952, 2
    %v954 = vadd.f32 %v952, %v953
    %v955 = vrot.slane %v954, 1
    %v956 = vadd.f32 %v954, %v955
    %v957 = vsel %vm531, %v819, 0.0
    %v958 = vrot.slane %v957, 4
    %v959 = vadd.f32 %v957, %v958
    %v960 = vrot.slane %v959, 2
    %v961 = vadd.f32 %v959, %v960
    %v962 = vrot.slane %v961, 1
    %v963 = vadd.f32 %v961, %v962
    %v964 = vsel %vm531, %v821, 0.0
    %v965 = vrot.slane %v964, 4
    %v966 = vadd.f32 %v964, %v965
    %v967 = vrot.slane %v966, 2
    %v968 = vadd.f32 %v966, %v967
    %v969 = vrot.slane %v968, 1
    %v970 = vadd.f32 %v968, %v969
    %v971 = vsel %vm531, %v823, 0.0
    %v972 = vrot.slane %v971, 4
    %v973 = vadd.f32 %v971, %v972
    %v974 = vrot.slane %v973, 2
    %v975 = vadd.f32 %v973, %v974
    %v976 = vrot.slane %v975, 1
    %v977 = vadd.f32 %v975, %v976
    %v978 = vsel %vm531, %v825, 0.0
    %v979 = vrot.slane %v978, 4
    %v980 = vadd.f32 %v978, %v979
    %v981 = vrot.slane %v980, 2
    %v982 = vadd.f32 %v980, %v981
    %v983 = vrot.slane %v982, 1
    %v984 = vadd.f32 %v982, %v983
    %v985 = vsel %vm531, %v827, 0.0
    %v986 = vrot.slane %v985, 4
    %v987 = vadd.f32 %v985, %v986
    %v988 = vrot.slane %v987, 2
    %v989 = vadd.f32 %v987, %v988
    %v990 = vrot.slane %v989, 1
    %v991 = vadd.f32 %v989, %v990
    %v992 = vsel %vm531, %v829, 0.0
    %v993 = vrot.slane %v992, 4
    %v994 = vadd.f32 %v992, %v993
    %v995 = vrot.slane %v994, 2
    %v996 = vadd.f32 %v994, %v995
    %v997 = vrot.slane %v996, 1
    %v998 = vadd.f32 %v996, %v997
    %v999 = vsel %vm531, %v831, 0.0
    %v1000 = vrot.slane %v999, 4
    %v1001 = vadd.f32 %v999, %v1000
    %v1002 = vrot.slane %v1001, 2
    %v1003 = vadd.f32 %v1001, %v1002
    %v1004 = vrot.slane %v1003, 1
    %v1005 = vadd.f32 %v1003, %v1004
    %v1006 = vsel %vm531, %v833, 0.0
    %v1007 = vrot.slane %v1006, 4
    %v1008 = vadd.f32 %v1006, %v1007
    %v1009 = vrot.slane %v1008, 2
    %v1010 = vadd.f32 %v1008, %v1009
    %v1011 = vrot.slane %v1010, 1
    %v1012 = vadd.f32 %v1010, %v1011
    %v1013 = vsel %vm531, %v835, 0.0
    %v1014 = vrot.slane %v1013, 4
    %v1015 = vadd.f32 %v1013, %v1014
    %v1016 = vrot.slane %v1015, 2
    %v1017 = vadd.f32 %v1015, %v1016
    %v1018 = vrot.slane %v1017, 1
    %v1019 = vadd.f32 %v1017, %v1018
    %v1020 = vsel %vm531, %v837, 0.0
    %v1021 = vrot.slane %v1020, 4
    %v1022 = vadd.f32 %v1020, %v1021
    %v1023 = vrot.slane %v1022, 2
    %v1024 = vadd.f32 %v1022, %v1023
    %v1025 = vrot.slane %v1024, 1
    %v1026 = vadd.f32 %v1024, %v1025
    %v1027 = vsel %vm531, %v839, 0.0
    %v1028 = vrot.slane %v1027, 4
    %v1029 = vadd.f32 %v1027, %v1028
    %v1030 = vrot.slane %v1029, 2
    %v1031 = vadd.f32 %v1029, %v1030
    %v1032 = vrot.slane %v1031, 1
    %v1033 = vadd.f32 %v1031, %v1032
    %v1034 = vsel %vm531, %v841, 0.0
    %v1035 = vrot.slane %v1034, 4
    %v1036 = vadd.f32 %v1034, %v1035
    %v1037 = vrot.slane %v1036, 2
    %v1038 = vadd.f32 %v1036, %v1037
    %v1039 = vrot.slane %v1038, 1
    %v1040 = vadd.f32 %v1038, %v1039
    %v1041 = vsel %vm531, %v843, 0.0
    %v1042 = vrot.slane %v1041, 4
    %v1043 = vadd.f32 %v1041, %v1042
    %v1044 = vrot.slane %v1043, 2
    %v1045 = vadd.f32 %v1043, %v1044
    %v1046 = vrot.slane %v1045, 1
    %v1047 = vadd.f32 %v1045, %v1046
    %v1048 = vsel %vm531, %v845, 0.0
    %v1049 = vrot.slane %v1048, 4
    %v1050 = vadd.f32 %v1048, %v1049
    %v1051 = vrot.slane %v1050, 2
    %v1052 = vadd.f32 %v1050, %v1051
    %v1053 = vrot.slane %v1052, 1
    %v1054 = vadd.f32 %v1052, %v1053
    %v1055 = vsel %vm531, %v847, 0.0
    %v1056 = vrot.slane %v1055, 4
    %v1057 = vadd.f32 %v1055, %v1056
    %v1058 = vrot.slane %v1057, 2
    %v1059 = vadd.f32 %v1057, %v1058
    %v1060 = vrot.slane %v1059, 1
    %v1061 = vadd.f32 %v1059, %v1060
    %v1062 = vsel %vm531, %v849, 0.0
    %v1063 = vrot.slane %v1062, 4
    %v1064 = vadd.f32 %v1062, %v1063
    %v1065 = vrot.slane %v1064, 2
    %v1066 = vadd.f32 %v1064, %v1065
    %v1067 = vrot.slane %v1066, 1
    %v1068 = vadd.f32 %v1066, %v1067
    %v1069 = vsel %vm531, %v851, 0.0
    %v1070 = vrot.slane %v1069, 4
    %v1071 = vadd.f32 %v1069, %v1070
    %v1072 = vrot.slane %v1071, 2
    %v1073 = vadd.f32 %v1071, %v1072
    %v1074 = vrot.slane %v1073, 1
    %v1075 = vadd.f32 %v1073, %v1074
    %v1076 = vrcp.pop %v858
    %v1077 = vmul.f32 %v858, %v1076
    %v1078 = vsub.f32 1.0, %v1077
    %v1079 = vmul.f32 %v1076, %v1078
    %v1080 = vadd.f32 %v1076, %v1079
    %vm1081 = vweird.f32 %v858
    %vm1082 = vweird.f32 %v1076
    %vm1083 = vmor %vm1081, %vm1082
    %v1084 = vsel %vm1083, %v1076, %v1080
    %v1085 = vand.u32 2147483647, %v858
    %vm1086 = vcmp.eq.f32.partialorder %v1085, 8.507059e+37
    %v1087 = vand.u32 %v858, 2147483648
    %v1088 = vor.u32 1.1754944e-38, %v1087
    %v1089 = vsel %vm1086, %v1088, %v1084
    %v1090 = vmul.f32 %v789, %v1089
    %v1091 = vrcp.pop %v865
    %v1092 = vmul.f32 %v865, %v1091
    %v1093 = vsub.f32 1.0, %v1092
    %v1094 = vmul.f32 %v1091, %v1093
    %v1095 = vadd.f32 %v1091, %v1094
    %vm1096 = vweird.f32 %v865
    %vm1097 = vweird.f32 %v1091
    %vm1098 = vmor %vm1096, %vm1097
    %v1099 = vsel %vm1098, %v1091, %v1095
    %v1100 = vand.u32 2147483647, %v865
    %vm1101 = vcmp.eq.f32.partialorder %v1100, 8.507059e+37
    %v1102 = vand.u32 %v865, 2147483648
    %v1103 = vor.u32 1.1754944e-38, %v1102
    %v1104 = vsel %vm1101, %v1103, %v1099
    %v1105 = vmul.f32 %v791, %v1104
    %v1106 = vrcp.pop %v872
    %v1107 = vmul.f32 %v872, %v1106
    %v1108 = vsub.f32 1.0, %v1107
    %v1109 = vmul.f32 %v1106, %v1108
    %v1110 = vadd.f32 %v1106, %v1109
    %vm1111 = vweird.f32 %v872
    %vm1112 = vweird.f32 %v1106
    %vm1113 = vmor %vm1111, %vm1112
    %v1114 = vsel %vm1113, %v1106, %v1110
    %v1115 = vand.u32 2147483647, %v872
    %vm1116 = vcmp.eq.f32.partialorder %v1115, 8.507059e+37
    %v1117 = vand.u32 %v872, 2147483648
    %v1118 = vor.u32 1.1754944e-38, %v1117
    %v1119 = vsel %vm1116, %v1118, %v1114
    %v1120 = vmul.f32 %v793, %v1119
    %v1121 = vrcp.pop %v879
    %v1122 = vmul.f32 %v879, %v1121
    %v1123 = vsub.f32 1.0, %v1122
    %v1124 = vmul.f32 %v1121, %v1123
    %v1125 = vadd.f32 %v1121, %v1124
    %vm1126 = vweird.f32 %v879
    %vm1127 = vweird.f32 %v1121
    %vm1128 = vmor %vm1126, %vm1127
    %v1129 = vsel %vm1128, %v1121, %v1125
    %v1130 = vand.u32 2147483647, %v879
    %vm1131 = vcmp.eq.f32.partialorder %v1130, 8.507059e+37
    %v1132 = vand.u32 %v879, 2147483648
    %v1133 = vor.u32 1.1754944e-38, %v1132
    %v1134 = vsel %vm1131, %v1133, %v1129
    %v1135 = vmul.f32 %v795, %v1134
    %v1136 = vrcp.pop %v886
    %v1137 = vmul.f32 %v886, %v1136
    %v1138 = vsub.f32 1.0, %v1137
    %v1139 = vmul.f32 %v1136, %v1138
    %v1140 = vadd.f32 %v1136, %v1139
    %vm1141 = vweird.f32 %v886
    %vm1142 = vweird.f32 %v1136
    %vm1143 = vmor %vm1141, %vm1142
    %v1144 = vsel %vm1143, %v1136, %v1140
    %v1145 = vand.u32 2147483647, %v886
    %vm1146 = vcmp.eq.f32.partialorder %v1145, 8.507059e+37
    %v1147 = vand.u32 %v886, 2147483648
    %v1148 = vor.u32 1.1754944e-38, %v1147
    %v1149 = vsel %vm1146, %v1148, %v1144
    %v1150 = vmul.f32 %v797, %v1149
    %v1151 = vrcp.pop %v893
    %v1152 = vmul.f32 %v893, %v1151
    %v1153 = vsub.f32 1.0, %v1152
    %v1154 = vmul.f32 %v1151, %v1153
    %v1155 = vadd.f32 %v1151, %v1154
    %vm1156 = vweird.f32 %v893
    %vm1157 = vweird.f32 %v1151
    %vm1158 = vmor %vm1156, %vm1157
    %v1159 = vsel %vm1158, %v1151, %v1155
    %v1160 = vand.u32 2147483647, %v893
    %vm1161 = vcmp.eq.f32.partialorder %v1160, 8.507059e+37
    %v1162 = vand.u32 %v893, 2147483648
    %v1163 = vor.u32 1.1754944e-38, %v1162
    %v1164 = vsel %vm1161, %v1163, %v1159
    %v1165 = vmul.f32 %v799, %v1164
    %v1166 = vrcp.pop %v900
    %v1167 = vmul.f32 %v900, %v1166
    %v1168 = vsub.f32 1.0, %v1167
    %v1169 = vmul.f32 %v1166, %v1168
    %v1170 = vadd.f32 %v1166, %v1169
    %vm1171 = vweird.f32 %v900
    %vm1172 = vweird.f32 %v1166
    %vm1173 = vmor %vm1171, %vm1172
    %v1174 = vsel %vm1173, %v1166, %v1170
    %v1175 = vand.u32 2147483647, %v900
    %vm1176 = vcmp.eq.f32.partialorder %v1175, 8.507059e+37
    %v1177 = vand.u32 %v900, 2147483648
    %v1178 = vor.u32 1.1754944e-38, %v1177
    %v1179 = vsel %vm1176, %v1178, %v1174
    %v1180 = vmul.f32 %v801, %v1179
    %v1181 = vrcp.pop %v907
    %v1182 = vmul.f32 %v907, %v1181
    %v1183 = vsub.f32 1.0, %v1182
    %v1184 = vmul.f32 %v1181, %v1183
    %v1185 = vadd.f32 %v1181, %v1184
    %vm1186 = vweird.f32 %v907
    %vm1187 = vweird.f32 %v1181
    %vm1188 = vmor %vm1186, %vm1187
    %v1189 = vsel %vm1188, %v1181, %v1185
    %v1190 = vand.u32 2147483647, %v907
    %vm1191 = vcmp.eq.f32.partialorder %v1190, 8.507059e+37
    %v1192 = vand.u32 %v907, 2147483648
    %v1193 = vor.u32 1.1754944e-38, %v1192
    %v1194 = vsel %vm1191, %v1193, %v1189
    %v1195 = vmul.f32 %v803, %v1194
    %v1196 = vrcp.pop %v914
    %v1197 = vmul.f32 %v914, %v1196
    %v1198 = vsub.f32 1.0, %v1197
    %v1199 = vmul.f32 %v1196, %v1198
    %v1200 = vadd.f32 %v1196, %v1199
    %vm1201 = vweird.f32 %v914
    %vm1202 = vweird.f32 %v1196
    %vm1203 = vmor %vm1201, %vm1202
    %v1204 = vsel %vm1203, %v1196, %v1200
    %v1205 = vand.u32 2147483647, %v914
    %vm1206 = vcmp.eq.f32.partialorder %v1205, 8.507059e+37
    %v1207 = vand.u32 %v914, 2147483648
    %v1208 = vor.u32 1.1754944e-38, %v1207
    %v1209 = vsel %vm1206, %v1208, %v1204
    %v1210 = vmul.f32 %v805, %v1209
    %v1211 = vrcp.pop %v921
    %v1212 = vmul.f32 %v921, %v1211
    %v1213 = vsub.f32 1.0, %v1212
    %v1214 = vmul.f32 %v1211, %v1213
    %v1215 = vadd.f32 %v1211, %v1214
    %vm1216 = vweird.f32 %v921
    %vm1217 = vweird.f32 %v1211
    %vm1218 = vmor %vm1216, %vm1217
    %v1219 = vsel %vm1218, %v1211, %v1215
    %v1220 = vand.u32 2147483647, %v921
    %vm1221 = vcmp.eq.f32.partialorder %v1220, 8.507059e+37
    %v1222 = vand.u32 %v921, 2147483648
    %v1223 = vor.u32 1.1754944e-38, %v1222
    %v1224 = vsel %vm1221, %v1223, %v1219
    %v1225 = vmul.f32 %v807, %v1224
    %v1226 = vrcp.pop %v928
    %v1227 = vmul.f32 %v928, %v1226
    %v1228 = vsub.f32 1.0, %v1227
    %v1229 = vmul.f32 %v1226, %v1228
    %v1230 = vadd.f32 %v1226, %v1229
    %vm1231 = vweird.f32 %v928
    %vm1232 = vweird.f32 %v1226
    %vm1233 = vmor %vm1231, %vm1232
    %v1234 = vsel %vm1233, %v1226, %v1230
    %v1235 = vand.u32 2147483647, %v928
    %vm1236 = vcmp.eq.f32.partialorder %v1235, 8.507059e+37
    %v1237 = vand.u32 %v928, 2147483648
    %v1238 = vor.u32 1.1754944e-38, %v1237
    %v1239 = vsel %vm1236, %v1238, %v1234
    %v1240 = vmul.f32 %v809, %v1239
    %v1241 = vrcp.pop %v935
    %v1242 = vmul.f32 %v935, %v1241
    %v1243 = vsub.f32 1.0, %v1242
    %v1244 = vmul.f32 %v1241, %v1243
    %v1245 = vadd.f32 %v1241, %v1244
    %vm1246 = vweird.f32 %v935
    %vm1247 = vweird.f32 %v1241
    %vm1248 = vmor %vm1246, %vm1247
    %v1249 = vsel %vm1248, %v1241, %v1245
    %v1250 = vand.u32 2147483647, %v935
    %vm1251 = vcmp.eq.f32.partialorder %v1250, 8.507059e+37
    %v1252 = vand.u32 %v935, 2147483648
    %v1253 = vor.u32 1.1754944e-38, %v1252
    %v1254 = vsel %vm1251, %v1253, %v1249
    %v1255 = vmul.f32 %v811, %v1254
    %v1256 = vrcp.pop %v942
    %v1257 = vmul.f32 %v942, %v1256
    %v1258 = vsub.f32 1.0, %v1257
    %v1259 = vmul.f32 %v1256, %v1258
    %v1260 = vadd.f32 %v1256, %v1259
    %vm1261 = vweird.f32 %v942
    %vm1262 = vweird.f32 %v1256
    %vm1263 = vmor %vm1261, %vm1262
    %v1264 = vsel %vm1263, %v1256, %v1260
    %v1265 = vand.u32 2147483647, %v942
    %vm1266 = vcmp.eq.f32.partialorder %v1265, 8.507059e+37
    %v1267 = vand.u32 %v942, 2147483648
    %v1268 = vor.u32 1.1754944e-38, %v1267
    %v1269 = vsel %vm1266, %v1268, %v1264
    %v1270 = vmul.f32 %v813, %v1269
    %v1271 = vrcp.pop %v949
    %v1272 = vmul.f32 %v949, %v1271
    %v1273 = vsub.f32 1.0, %v1272
    %v1274 = vmul.f32 %v1271, %v1273
    %v1275 = vadd.f32 %v1271, %v1274
    %vm1276 = vweird.f32 %v949
    %vm1277 = vweird.f32 %v1271
    %vm1278 = vmor %vm1276, %vm1277
    %v1279 = vsel %vm1278, %v1271, %v1275
    %v1280 = vand.u32 2147483647, %v949
    %vm1281 = vcmp.eq.f32.partialorder %v1280, 8.507059e+37
    %v1282 = vand.u32 %v949, 2147483648
    %v1283 = vor.u32 1.1754944e-38, %v1282
    %v1284 = vsel %vm1281, %v1283, %v1279
    %v1285 = vmul.f32 %v815, %v1284
    %v1286 = vrcp.pop %v956
    %v1287 = vmul.f32 %v956, %v1286
    %v1288 = vsub.f32 1.0, %v1287
    %v1289 = vmul.f32 %v1286, %v1288
    %v1290 = vadd.f32 %v1286, %v1289
    %vm1291 = vweird.f32 %v956
    %vm1292 = vweird.f32 %v1286
    %vm1293 = vmor %vm1291, %vm1292
    %v1294 = vsel %vm1293, %v1286, %v1290
    %v1295 = vand.u32 2147483647, %v956
    %vm1296 = vcmp.eq.f32.partialorder %v1295, 8.507059e+37
    %v1297 = vand.u32 %v956, 2147483648
    %v1298 = vor.u32 1.1754944e-38, %v1297
    %v1299 = vsel %vm1296, %v1298, %v1294
    %v1300 = vmul.f32 %v817, %v1299
    %v1301 = vrcp.pop %v963
    %v1302 = vmul.f32 %v963, %v1301
    %v1303 = vsub.f32 1.0, %v1302
    %v1304 = vmul.f32 %v1301, %v1303
    %v1305 = vadd.f32 %v1301, %v1304
    %vm1306 = vweird.f32 %v963
    %vm1307 = vweird.f32 %v1301
    %vm1308 = vmor %vm1306, %vm1307
    %v1309 = vsel %vm1308, %v1301, %v1305
    %v1310 = vand.u32 2147483647, %v963
    %vm1311 = vcmp.eq.f32.partialorder %v1310, 8.507059e+37
    %v1312 = vand.u32 %v963, 2147483648
    %v1313 = vor.u32 1.1754944e-38, %v1312
    %v1314 = vsel %vm1311, %v1313, %v1309
    %v1315 = vmul.f32 %v819, %v1314
    %v1316 = vrcp.pop %v970
    %v1317 = vmul.f32 %v970, %v1316
    %v1318 = vsub.f32 1.0, %v1317
    %v1319 = vmul.f32 %v1316, %v1318
    %v1320 = vadd.f32 %v1316, %v1319
    %vm1321 = vweird.f32 %v970
    %vm1322 = vweird.f32 %v1316
    %vm1323 = vmor %vm1321, %vm1322
    %v1324 = vsel %vm1323, %v1316, %v1320
    %v1325 = vand.u32 2147483647, %v970
    %vm1326 = vcmp.eq.f32.partialorder %v1325, 8.507059e+37
    %v1327 = vand.u32 %v970, 2147483648
    %v1328 = vor.u32 1.1754944e-38, %v1327
    %v1329 = vsel %vm1326, %v1328, %v1324
    %v1330 = vmul.f32 %v821, %v1329
    %v1331 = vrcp.pop %v977
    %v1332 = vmul.f32 %v977, %v1331
    %v1333 = vsub.f32 1.0, %v1332
    %v1334 = vmul.f32 %v1331, %v1333
    %v1335 = vadd.f32 %v1331, %v1334
    %vm1336 = vweird.f32 %v977
    %vm1337 = vweird.f32 %v1331
    %vm1338 = vmor %vm1336, %vm1337
    %v1339 = vsel %vm1338, %v1331, %v1335
    %v1340 = vand.u32 2147483647, %v977
    %vm1341 = vcmp.eq.f32.partialorder %v1340, 8.507059e+37
    %v1342 = vand.u32 %v977, 2147483648
    %v1343 = vor.u32 1.1754944e-38, %v1342
    %v1344 = vsel %vm1341, %v1343, %v1339
    %v1345 = vmul.f32 %v823, %v1344
    %v1346 = vrcp.pop %v984
    %v1347 = vmul.f32 %v984, %v1346
    %v1348 = vsub.f32 1.0, %v1347
    %v1349 = vmul.f32 %v1346, %v1348
    %v1350 = vadd.f32 %v1346, %v1349
    %vm1351 = vweird.f32 %v984
    %vm1352 = vweird.f32 %v1346
    %vm1353 = vmor %vm1351, %vm1352
    %v1354 = vsel %vm1353, %v1346, %v1350
    %v1355 = vand.u32 2147483647, %v984
    %vm1356 = vcmp.eq.f32.partialorder %v1355, 8.507059e+37
    %v1357 = vand.u32 %v984, 2147483648
    %v1358 = vor.u32 1.1754944e-38, %v1357
    %v1359 = vsel %vm1356, %v1358, %v1354
    %v1360 = vmul.f32 %v825, %v1359
    %v1361 = vrcp.pop %v991
    %v1362 = vmul.f32 %v991, %v1361
    %v1363 = vsub.f32 1.0, %v1362
    %v1364 = vmul.f32 %v1361, %v1363
    %v1365 = vadd.f32 %v1361, %v1364
    %vm1366 = vweird.f32 %v991
    %vm1367 = vweird.f32 %v1361
    %vm1368 = vmor %vm1366, %vm1367
    %v1369 = vsel %vm1368, %v1361, %v1365
    %v1370 = vand.u32 2147483647, %v991
    %vm1371 = vcmp.eq.f32.partialorder %v1370, 8.507059e+37
    %v1372 = vand.u32 %v991, 2147483648
    %v1373 = vor.u32 1.1754944e-38, %v1372
    %v1374 = vsel %vm1371, %v1373, %v1369
    %v1375 = vmul.f32 %v827, %v1374
    %v1376 = vrcp.pop %v998
    %v1377 = vmul.f32 %v998, %v1376
    %v1378 = vsub.f32 1.0, %v1377
    %v1379 = vmul.f32 %v1376, %v1378
    %v1380 = vadd.f32 %v1376, %v1379
    %vm1381 = vweird.f32 %v998
    %vm1382 = vweird.f32 %v1376
    %vm1383 = vmor %vm1381, %vm1382
    %v1384 = vsel %vm1383, %v1376, %v1380
    %v1385 = vand.u32 2147483647, %v998
    %vm1386 = vcmp.eq.f32.partialorder %v1385, 8.507059e+37
    %v1387 = vand.u32 %v998, 2147483648
    %v1388 = vor.u32 1.1754944e-38, %v1387
    %v1389 = vsel %vm1386, %v1388, %v1384
    %v1390 = vmul.f32 %v829, %v1389
    %v1391 = vrcp.pop %v1005
    %v1392 = vmul.f32 %v1005, %v1391
    %v1393 = vsub.f32 1.0, %v1392
    %v1394 = vmul.f32 %v1391, %v1393
    %v1395 = vadd.f32 %v1391, %v1394
    %vm1396 = vweird.f32 %v1005
    %vm1397 = vweird.f32 %v1391
    %vm1398 = vmor %vm1396, %vm1397
    %v1399 = vsel %vm1398, %v1391, %v1395
    %v1400 = vand.u32 2147483647, %v1005
    %vm1401 = vcmp.eq.f32.partialorder %v1400, 8.507059e+37
    %v1402 = vand.u32 %v1005, 2147483648
    %v1403 = vor.u32 1.1754944e-38, %v1402
    %v1404 = vsel %vm1401, %v1403, %v1399
    %v1405 = vmul.f32 %v831, %v1404
    %v1406 = vrcp.pop %v1012
    %v1407 = vmul.f32 %v1012, %v1406
    %v1408 = vsub.f32 1.0, %v1407
    %v1409 = vmul.f32 %v1406, %v1408
    %v1410 = vadd.f32 %v1406, %v1409
    %vm1411 = vweird.f32 %v1012
    %vm1412 = vweird.f32 %v1406
    %vm1413 = vmor %vm1411, %vm1412
    %v1414 = vsel %vm1413, %v1406, %v1410
    %v1415 = vand.u32 2147483647, %v1012
    %vm1416 = vcmp.eq.f32.partialorder %v1415, 8.507059e+37
    %v1417 = vand.u32 %v1012, 2147483648
    %v1418 = vor.u32 1.1754944e-38, %v1417
    %v1419 = vsel %vm1416, %v1418, %v1414
    %v1420 = vmul.f32 %v833, %v1419
    %v1421 = vrcp.pop %v1019
    %v1422 = vmul.f32 %v1019, %v1421
    %v1423 = vsub.f32 1.0, %v1422
    %v1424 = vmul.f32 %v1421, %v1423
    %v1425 = vadd.f32 %v1421, %v1424
    %vm1426 = vweird.f32 %v1019
    %vm1427 = vweird.f32 %v1421
    %vm1428 = vmor %vm1426, %vm1427
    %v1429 = vsel %vm1428, %v1421, %v1425
    %v1430 = vand.u32 2147483647, %v1019
    %vm1431 = vcmp.eq.f32.partialorder %v1430, 8.507059e+37
    %v1432 = vand.u32 %v1019, 2147483648
    %v1433 = vor.u32 1.1754944e-38, %v1432
    %v1434 = vsel %vm1431, %v1433, %v1429
    %v1435 = vmul.f32 %v835, %v1434
    %v1436 = vrcp.pop %v1026
    %v1437 = vmul.f32 %v1026, %v1436
    %v1438 = vsub.f32 1.0, %v1437
    %v1439 = vmul.f32 %v1436, %v1438
    %v1440 = vadd.f32 %v1436, %v1439
    %vm1441 = vweird.f32 %v1026
    %vm1442 = vweird.f32 %v1436
    %vm1443 = vmor %vm1441, %vm1442
    %v1444 = vsel %vm1443, %v1436, %v1440
    %v1445 = vand.u32 2147483647, %v1026
    %vm1446 = vcmp.eq.f32.partialorder %v1445, 8.507059e+37
    %v1447 = vand.u32 %v1026, 2147483648
    %v1448 = vor.u32 1.1754944e-38, %v1447
    %v1449 = vsel %vm1446, %v1448, %v1444
    %v1450 = vmul.f32 %v837, %v1449
    %v1451 = vrcp.pop %v1033
    %v1452 = vmul.f32 %v1033, %v1451
    %v1453 = vsub.f32 1.0, %v1452
    %v1454 = vmul.f32 %v1451, %v1453
    %v1455 = vadd.f32 %v1451, %v1454
    %vm1456 = vweird.f32 %v1033
    %vm1457 = vweird.f32 %v1451
    %vm1458 = vmor %vm1456, %vm1457
    %v1459 = vsel %vm1458, %v1451, %v1455
    %v1460 = vand.u32 2147483647, %v1033
    %vm1461 = vcmp.eq.f32.partialorder %v1460, 8.507059e+37
    %v1462 = vand.u32 %v1033, 2147483648
    %v1463 = vor.u32 1.1754944e-38, %v1462
    %v1464 = vsel %vm1461, %v1463, %v1459
    %v1465 = vmul.f32 %v839, %v1464
    %v1466 = vrcp.pop %v1040
    %v1467 = vmul.f32 %v1040, %v1466
    %v1468 = vsub.f32 1.0, %v1467
    %v1469 = vmul.f32 %v1466, %v1468
    %v1470 = vadd.f32 %v1466, %v1469
    %vm1471 = vweird.f32 %v1040
    %vm1472 = vweird.f32 %v1466
    %vm1473 = vmor %vm1471, %vm1472
    %v1474 = vsel %vm1473, %v1466, %v1470
    %v1475 = vand.u32 2147483647, %v1040
    %vm1476 = vcmp.eq.f32.partialorder %v1475, 8.507059e+37
    %v1477 = vand.u32 %v1040, 2147483648
    %v1478 = vor.u32 1.1754944e-38, %v1477
    %v1479 = vsel %vm1476, %v1478, %v1474
    %v1480 = vmul.f32 %v841, %v1479
    %v1481 = vrcp.pop %v1047
    %v1482 = vmul.f32 %v1047, %v1481
    %v1483 = vsub.f32 1.0, %v1482
    %v1484 = vmul.f32 %v1481, %v1483
    %v1485 = vadd.f32 %v1481, %v1484
    %vm1486 = vweird.f32 %v1047
    %vm1487 = vweird.f32 %v1481
    %vm1488 = vmor %vm1486, %vm1487
    %v1489 = vsel %vm1488, %v1481, %v1485
    %v1490 = vand.u32 2147483647, %v1047
    %vm1491 = vcmp.eq.f32.partialorder %v1490, 8.507059e+37
    %v1492 = vand.u32 %v1047, 2147483648
    %v1493 = vor.u32 1.1754944e-38, %v1492
    %v1494 = vsel %vm1491, %v1493, %v1489
    %v1495 = vmul.f32 %v843, %v1494
    %v1496 = vrcp.pop %v1054
    %v1497 = vmul.f32 %v1054, %v1496
    %v1498 = vsub.f32 1.0, %v1497
    %v1499 = vmul.f32 %v1496, %v1498
    %v1500 = vadd.f32 %v1496, %v1499
    %vm1501 = vweird.f32 %v1054
    %vm1502 = vweird.f32 %v1496
    %vm1503 = vmor %vm1501, %vm1502
    %v1504 = vsel %vm1503, %v1496, %v1500
    %v1505 = vand.u32 2147483647, %v1054
    %vm1506 = vcmp.eq.f32.partialorder %v1505, 8.507059e+37
    %v1507 = vand.u32 %v1054, 2147483648
    %v1508 = vor.u32 1.1754944e-38, %v1507
    %v1509 = vsel %vm1506, %v1508, %v1504
    %v1510 = vmul.f32 %v845, %v1509
    %v1511 = vrcp.pop %v1061
    %v1512 = vmul.f32 %v1061, %v1511
    %v1513 = vsub.f32 1.0, %v1512
    %v1514 = vmul.f32 %v1511, %v1513
    %v1515 = vadd.f32 %v1511, %v1514
    %vm1516 = vweird.f32 %v1061
    %vm1517 = vweird.f32 %v1511
    %vm1518 = vmor %vm1516, %vm1517
    %v1519 = vsel %vm1518, %v1511, %v1515
    %v1520 = vand.u32 2147483647, %v1061
    %vm1521 = vcmp.eq.f32.partialorder %v1520, 8.507059e+37
    %v1522 = vand.u32 %v1061, 2147483648
    %v1523 = vor.u32 1.1754944e-38, %v1522
    %v1524 = vsel %vm1521, %v1523, %v1519
    %v1525 = vmul.f32 %v847, %v1524
    %v1526 = vrcp.pop %v1068
    %v1527 = vmul.f32 %v1068, %v1526
    %v1528 = vsub.f32 1.0, %v1527
    %v1529 = vmul.f32 %v1526, %v1528
    %v1530 = vadd.f32 %v1526, %v1529
    %vm1531 = vweird.f32 %v1068
    %vm1532 = vweird.f32 %v1526
    %vm1533 = vmor %vm1531, %vm1532
    %v1534 = vsel %vm1533, %v1526, %v1530
    %v1535 = vand.u32 2147483647, %v1068
    %vm1536 = vcmp.eq.f32.partialorder %v1535, 8.507059e+37
    %v1537 = vand.u32 %v1068, 2147483648
    %v1538 = vor.u32 1.1754944e-38, %v1537
    %v1539 = vsel %vm1536, %v1538, %v1534
    %v1540 = vmul.f32 %v849, %v1539
    %v1541 = vrcp.pop %v1075
    %v1542 = vmul.f32 %v1075, %v1541
    %v1543 = vsub.f32 1.0, %v1542
    %v1544 = vmul.f32 %v1541, %v1543
    %v1545 = vadd.f32 %v1541, %v1544
    %vm1546 = vweird.f32 %v1075
    %vm1547 = vweird.f32 %v1541
    %vm1548 = vmor %vm1546, %vm1547
    %v1549 = vsel %vm1548, %v1541, %v1545
    %v1550 = vand.u32 2147483647, %v1075
    %vm1551 = vcmp.eq.f32.partialorder %v1550, 8.507059e+37
    %v1552 = vand.u32 %v1075, 2147483648
    %v1553 = vor.u32 1.1754944e-38, %v1552
    %v1554 = vsel %vm1551, %v1553, %v1549
    %v1555 = vmul.f32 %v851, %v1554
    %v1556 = vld [vmem:[%s5] sm:$0xf]
    %v1558 = vsel %vm531, %v1090, 0
    %v1561 = vsel %vm531, %v1105, 0
    %v1564 = vsel %vm531, %v1120, 0
    %v1567 = vsel %vm531, %v1135, 0
    %v1570 = vsel %vm531, %v1150, 0
    %v1573 = vsel %vm531, %v1165, 0
    %v1576 = vsel %vm531, %v1180, 0
    %v1579 = vsel %vm531, %v1195, 0
    %v1582 = vsel %vm531, %v1210, 0
    %v1585 = vsel %vm531, %v1225, 0
    %v1588 = vsel %vm531, %v1240, 0
    %v1591 = vsel %vm531, %v1255, 0
    %v1594 = vsel %vm531, %v1270, 0
    %v1597 = vsel %vm531, %v1285, 0
    %v1600 = vsel %vm531, %v1300, 0
    %v1603 = vsel %vm531, %v1315, 0
    %v1606 = vsel %vm531, %v1330, 0
    %v1609 = vsel %vm531, %v1345, 0
    %v1612 = vsel %vm531, %v1360, 0
    %v1615 = vsel %vm531, %v1375, 0
    %v1618 = vsel %vm531, %v1390, 0
    %v1621 = vsel %vm531, %v1405, 0
    %v1624 = vsel %vm531, %v1420, 0
    %v1627 = vsel %vm531, %v1435, 0
    %v1630 = vsel %vm531, %v1450, 0
    %v1633 = vsel %vm531, %v1465, 0
    %v1636 = vsel %vm531, %v1480, 0
    %v1639 = vsel %vm531, %v1495, 0
    %v1642 = vsel %vm531, %v1510, 0
    %v1645 = vsel %vm531, %v1525, 0
    %v1648 = vsel %vm531, %v1540, 0
    %v1651 = vsel %vm531, %v1555, 0
    %vm1653 = vcmask 1043456
    %v1655 = vsel %vm1653, %v1556, 0
    %1657 = vmatpush.msra.mxu0 0.0
    %1658 = vmatpush.msra.mxu0 0.0
    %1659 = vmatpush.msra.mxu0 0.0
    %1660 = vmatpush.msra.mxu0 0.0
    %1661 = vmatpush.msra.mxu0 0.0
    %1662 = vmatpush.msra.mxu0 0.0
    %1663 = vmatpush.msra.mxu0 0.0
    %1664 = vmatpush.msra.mxu0 0.0
    %1665 = vmatpush.msra.mxu0 0.0
    %1666 = vmatpush.msra.mxu0 0.0
    %1667 = vmatpush.msra.mxu0 0.0
    %1668 = vmatpush.msra.mxu0 0.0
    %1669 = vmatpush.msra.mxu0 0.0
    %1670 = vmatpush.msra.mxu0 0.0
    %1671 = vmatpush.msra.mxu0 0.0
    %1672 = vmatpush.msra.mxu0 %v1655
    %1673 = vmatmul.f32.gmra.mxu0 %v1558
    %v1674 = vpop.f32.mrf.mxu0
    %v1675 = vadd.f32 0.0, %v1674
    %1676 = vmatmul.f32.gmra.mxu0 %v1561
    %v1677 = vpop.f32.mrf.mxu0
    %v1678 = vadd.f32 0.0, %v1677
    %1679 = vmatmul.f32.gmra.mxu0 %v1564
    %v1680 = vpop.f32.mrf.mxu0
    %v1681 = vadd.f32 0.0, %v1680
    %1682 = vmatmul.f32.gmra.mxu0 %v1567
    %v1683 = vpop.f32.mrf.mxu0
    %v1684 = vadd.f32 0.0, %v1683
    %1685 = vmatmul.f32.gmra.mxu0 %v1570
    %v1686 = vpop.f32.mrf.mxu0
    %v1687 = vadd.f32 0.0, %v1686
    %1688 = vmatmul.f32.gmra.mxu0 %v1573
    %v1689 = vpop.f32.mrf.mxu0
    %v1690 = vadd.f32 0.0, %v1689
    %1691 = vmatmul.f32.gmra.mxu0 %v1576
    %v1692 = vpop.f32.mrf.mxu0
    %v1693 = vadd.f32 0.0, %v1692
    %1694 = vmatmul.f32.gmra.mxu0 %v1579
    %v1695 = vpop.f32.mrf.mxu0
    %v1696 = vadd.f32 0.0, %v1695
    %1697 = vmatmul.f32.gmra.mxu0 %v1582
    %v1698 = vpop.f32.mrf.mxu0
    %v1699 = vadd.f32 0.0, %v1698
    %1700 = vmatmul.f32.gmra.mxu0 %v1585
    %v1701 = vpop.f32.mrf.mxu0
    %v1702 = vadd.f32 0.0, %v1701
    %1703 = vmatmul.f32.gmra.mxu0 %v1588
    %v1704 = vpop.f32.mrf.mxu0
    %v1705 = vadd.f32 0.0, %v1704
    %1706 = vmatmul.f32.gmra.mxu0 %v1591
    %v1707 = vpop.f32.mrf.mxu0
    %v1708 = vadd.f32 0.0, %v1707
    %1709 = vmatmul.f32.gmra.mxu0 %v1594
    %v1710 = vpop.f32.mrf.mxu0
    %v1711 = vadd.f32 0.0, %v1710
    %1712 = vmatmul.f32.gmra.mxu0 %v1597
    %v1713 = vpop.f32.mrf.mxu0
    %v1714 = vadd.f32 0.0, %v1713
    %1715 = vmatmul.f32.gmra.mxu0 %v1600
    %v1716 = vpop.f32.mrf.mxu0
    %v1717 = vadd.f32 0.0, %v1716
    %1718 = vmatmul.f32.gmra.mxu0 %v1603
    %v1719 = vpop.f32.mrf.mxu0
    %v1720 = vadd.f32 0.0, %v1719
    %1721 = vmatmul.f32.gmra.mxu0 %v1606
    %v1722 = vpop.f32.mrf.mxu0
    %v1723 = vadd.f32 0.0, %v1722
    %1724 = vmatmul.f32.gmra.mxu0 %v1609
    %v1725 = vpop.f32.mrf.mxu0
    %v1726 = vadd.f32 0.0, %v1725
    %1727 = vmatmul.f32.gmra.mxu0 %v1612
    %v1728 = vpop.f32.mrf.mxu0
    %v1729 = vadd.f32 0.0, %v1728
    %1730 = vmatmul.f32.gmra.mxu0 %v1615
    %v1731 = vpop.f32.mrf.mxu0
    %v1732 = vadd.f32 0.0, %v1731
    %1733 = vmatmul.f32.gmra.mxu0 %v1618
    %v1734 = vpop.f32.mrf.mxu0
    %v1735 = vadd.f32 0.0, %v1734
    %1736 = vmatmul.f32.gmra.mxu0 %v1621
    %v1737 = vpop.f32.mrf.mxu0
    %v1738 = vadd.f32 0.0, %v1737
    %1739 = vmatmul.f32.gmra.mxu0 %v1624
    %v1740 = vpop.f32.mrf.mxu0
    %v1741 = vadd.f32 0.0, %v1740
    %1742 = vmatmul.f32.gmra.mxu0 %v1627
    %v1743 = vpop.f32.mrf.mxu0
    %v1744 = vadd.f32 0.0, %v1743
    %1745 = vmatmul.f32.gmra.mxu0 %v1630
    %v1746 = vpop.f32.mrf.mxu0
    %v1747 = vadd.f32 0.0, %v1746
    %1748 = vmatmul.f32.gmra.mxu0 %v1633
    %v1749 = vpop.f32.mrf.mxu0
    %v1750 = vadd.f32 0.0, %v1749
    %1751 = vmatmul.f32.gmra.mxu0 %v1636
    %v1752 = vpop.f32.mrf.mxu0
    %v1753 = vadd.f32 0.0, %v1752
    %1754 = vmatmul.f32.gmra.mxu0 %v1639
    %v1755 = vpop.f32.mrf.mxu0
    %v1756 = vadd.f32 0.0, %v1755
    %1757 = vmatmul.f32.gmra.mxu0 %v1642
    %v1758 = vpop.f32.mrf.mxu0
    %v1759 = vadd.f32 0.0, %v1758
    %1760 = vmatmul.f32.gmra.mxu0 %v1645
    %v1761 = vpop.f32.mrf.mxu0
    %v1762 = vadd.f32 0.0, %v1761
    %1763 = vmatmul.f32.gmra.mxu0 %v1648
    %v1764 = vpop.f32.mrf.mxu0
    %v1765 = vadd.f32 0.0, %v1764
    %1766 = vmatmul.f32.gmra.mxu0 %v1651
    %v1767 = vpop.f32.mrf.mxu0
    %v1768 = vadd.f32 0.0, %v1767
    %1769 = vdwg.mxu0
    %v1770 = vmul.f32 %v1675, %v182
    %v1771 = vmul.f32 %v1678, %v185
    %v1772 = vmul.f32 %v1681, %v188
    %v1773 = vmul.f32 %v1684, %v191
    %v1774 = vmul.f32 %v1687, %v194
    %v1775 = vmul.f32 %v1690, %v197
    %v1776 = vmul.f32 %v1693, %v200
    %v1777 = vmul.f32 %v1696, %v203
    %v1778 = vmul.f32 %v1699, %v206
    %v1779 = vmul.f32 %v1702, %v209
    %v1780 = vmul.f32 %v1705, %v212
    %v1781 = vmul.f32 %v1708, %v215
    %v1782 = vmul.f32 %v1711, %v218
    %v1783 = vmul.f32 %v1714, %v221
    %v1784 = vmul.f32 %v1717, %v224
    %v1785 = vmul.f32 %v1720, %v227
    %v1786 = vmul.f32 %v1723, %v230
    %v1787 = vmul.f32 %v1726, %v233
    %v1788 = vmul.f32 %v1729, %v236
    %v1789 = vmul.f32 %v1732, %v239
    %v1790 = vmul.f32 %v1735, %v242
    %v1791 = vmul.f32 %v1738, %v245
    %v1792 = vmul.f32 %v1741, %v248
    %v1793 = vmul.f32 %v1744, %v251
    %v1794 = vmul.f32 %v1747, %v254
    %v1795 = vmul.f32 %v1750, %v257
    %v1796 = vmul.f32 %v1753, %v260
    %v1797 = vmul.f32 %v1756, %v263
    %v1798 = vmul.f32 %v1759, %v266
    %v1799 = vmul.f32 %v1762, %v269
    %v1800 = vmul.f32 %v1765, %v272
    %v1801 = vmul.f32 %v1768, %v275
    %v1802 = vsel %vm321, %v1770, 0.0
    %v1803 = vrot.slane %v1802, 4
    %v1804 = vadd.f32 %v1802, %v1803
    %v1805 = vrot.slane %v1804, 2
    %v1806 = vadd.f32 %v1804, %v1805
    %v1807 = vrot.slane %v1806, 1
    %v1808 = vadd.f32 %v1806, %v1807
    %v1809 = vsel %vm321, %v1771, 0.0
    %v1810 = vrot.slane %v1809, 4
    %v1811 = vadd.f32 %v1809, %v1810
    %v1812 = vrot.slane %v1811, 2
    %v1813 = vadd.f32 %v1811, %v1812
    %v1814 = vrot.slane %v1813, 1
    %v1815 = vadd.f32 %v1813, %v1814
    %v1816 = vsel %vm321, %v1772, 0.0
    %v1817 = vrot.slane %v1816, 4
    %v1818 = vadd.f32 %v1816, %v1817
    %v1819 = vrot.slane %v1818, 2
    %v1820 = vadd.f32 %v1818, %v1819
    %v1821 = vrot.slane %v1820, 1
    %v1822 = vadd.f32 %v1820, %v1821
    %v1823 = vsel %vm321, %v1773, 0.0
    %v1824 = vrot.slane %v1823, 4
    %v1825 = vadd.f32 %v1823, %v1824
    %v1826 = vrot.slane %v1825, 2
    %v1827 = vadd.f32 %v1825, %v1826
    %v1828 = vrot.slane %v1827, 1
    %v1829 = vadd.f32 %v1827, %v1828
    %v1830 = vsel %vm321, %v1774, 0.0
    %v1831 = vrot.slane %v1830, 4
    %v1832 = vadd.f32 %v1830, %v1831
    %v1833 = vrot.slane %v1832, 2
    %v1834 = vadd.f32 %v1832, %v1833
    %v1835 = vrot.slane %v1834, 1
    %v1836 = vadd.f32 %v1834, %v1835
    %v1837 = vsel %vm321, %v1775, 0.0
    %v1838 = vrot.slane %v1837, 4
    %v1839 = vadd.f32 %v1837, %v1838
    %v1840 = vrot.slane %v1839, 2
    %v1841 = vadd.f32 %v1839, %v1840
    %v1842 = vrot.slane %v1841, 1
    %v1843 = vadd.f32 %v1841, %v1842
    %v1844 = vsel %vm321, %v1776, 0.0
    %v1845 = vrot.slane %v1844, 4
    %v1846 = vadd.f32 %v1844, %v1845
    %v1847 = vrot.slane %v1846, 2
    %v1848 = vadd.f32 %v1846, %v1847
    %v1849 = vrot.slane %v1848, 1
    %v1850 = vadd.f32 %v1848, %v1849
    %v1851 = vsel %vm321, %v1777, 0.0
    %v1852 = vrot.slane %v1851, 4
    %v1853 = vadd.f32 %v1851, %v1852
    %v1854 = vrot.slane %v1853, 2
    %v1855 = vadd.f32 %v1853, %v1854
    %v1856 = vrot.slane %v1855, 1
    %v1857 = vadd.f32 %v1855, %v1856
    %v1858 = vsel %vm321, %v1778, 0.0
    %v1859 = vrot.slane %v1858, 4
    %v1860 = vadd.f32 %v1858, %v1859
    %v1861 = vrot.slane %v1860, 2
    %v1862 = vadd.f32 %v1860, %v1861
    %v1863 = vrot.slane %v1862, 1
    %v1864 = vadd.f32 %v1862, %v1863
    %v1865 = vsel %vm321, %v1779, 0.0
    %v1866 = vrot.slane %v1865, 4
    %v1867 = vadd.f32 %v1865, %v1866
    %v1868 = vrot.slane %v1867, 2
    %v1869 = vadd.f32 %v1867, %v1868
    %v1870 = vrot.slane %v1869, 1
    %v1871 = vadd.f32 %v1869, %v1870
    %v1872 = vsel %vm321, %v1780, 0.0
    %v1873 = vrot.slane %v1872, 4
    %v1874 = vadd.f32 %v1872, %v1873
    %v1875 = vrot.slane %v1874, 2
    %v1876 = vadd.f32 %v1874, %v1875
    %v1877 = vrot.slane %v1876, 1
    %v1878 = vadd.f32 %v1876, %v1877
    %v1879 = vsel %vm321, %v1781, 0.0
    %v1880 = vrot.slane %v1879, 4
    %v1881 = vadd.f32 %v1879, %v1880
    %v1882 = vrot.slane %v1881, 2
    %v1883 = vadd.f32 %v1881, %v1882
    %v1884 = vrot.slane %v1883, 1
    %v1885 = vadd.f32 %v1883, %v1884
    %v1886 = vsel %vm321, %v1782, 0.0
    %v1887 = vrot.slane %v1886, 4
    %v1888 = vadd.f32 %v1886, %v1887
    %v1889 = vrot.slane %v1888, 2
    %v1890 = vadd.f32 %v1888, %v1889
    %v1891 = vrot.slane %v1890, 1
    %v1892 = vadd.f32 %v1890, %v1891
    %v1893 = vsel %vm321, %v1783, 0.0
    %v1894 = vrot.slane %v1893, 4
    %v1895 = vadd.f32 %v1893, %v1894
    %v1896 = vrot.slane %v1895, 2
    %v1897 = vadd.f32 %v1895, %v1896
    %v1898 = vrot.slane %v1897, 1
    %v1899 = vadd.f32 %v1897, %v1898
    %v1900 = vsel %vm321, %v1784, 0.0
    %v1901 = vrot.slane %v1900, 4
    %v1902 = vadd.f32 %v1900, %v1901
    %v1903 = vrot.slane %v1902, 2
    %v1904 = vadd.f32 %v1902, %v1903
    %v1905 = vrot.slane %v1904, 1
    %v1906 = vadd.f32 %v1904, %v1905
    %v1907 = vsel %vm321, %v1785, 0.0
    %v1908 = vrot.slane %v1907, 4
    %v1909 = vadd.f32 %v1907, %v1908
    %v1910 = vrot.slane %v1909, 2
    %v1911 = vadd.f32 %v1909, %v1910
    %v1912 = vrot.slane %v1911, 1
    %v1913 = vadd.f32 %v1911, %v1912
    %v1914 = vsel %vm321, %v1786, 0.0
    %v1915 = vrot.slane %v1914, 4
    %v1916 = vadd.f32 %v1914, %v1915
    %v1917 = vrot.slane %v1916, 2
    %v1918 = vadd.f32 %v1916, %v1917
    %v1919 = vrot.slane %v1918, 1
    %v1920 = vadd.f32 %v1918, %v1919
    %v1921 = vsel %vm321, %v1787, 0.0
    %v1922 = vrot.slane %v1921, 4
    %v1923 = vadd.f32 %v1921, %v1922
    %v1924 = vrot.slane %v1923, 2
    %v1925 = vadd.f32 %v1923, %v1924
    %v1926 = vrot.slane %v1925, 1
    %v1927 = vadd.f32 %v1925, %v1926
    %v1928 = vsel %vm321, %v1788, 0.0
    %v1929 = vrot.slane %v1928, 4
    %v1930 = vadd.f32 %v1928, %v1929
    %v1931 = vrot.slane %v1930, 2
    %v1932 = vadd.f32 %v1930, %v1931
    %v1933 = vrot.slane %v1932, 1
    %v1934 = vadd.f32 %v1932, %v1933
    %v1935 = vsel %vm321, %v1789, 0.0
    %v1936 = vrot.slane %v1935, 4
    %v1937 = vadd.f32 %v1935, %v1936
    %v1938 = vrot.slane %v1937, 2
    %v1939 = vadd.f32 %v1937, %v1938
    %v1940 = vrot.slane %v1939, 1
    %v1941 = vadd.f32 %v1939, %v1940
    %v1942 = vsel %vm321, %v1790, 0.0
    %v1943 = vrot.slane %v1942, 4
    %v1944 = vadd.f32 %v1942, %v1943
    %v1945 = vrot.slane %v1944, 2
    %v1946 = vadd.f32 %v1944, %v1945
    %v1947 = vrot.slane %v1946, 1
    %v1948 = vadd.f32 %v1946, %v1947
    %v1949 = vsel %vm321, %v1791, 0.0
    %v1950 = vrot.slane %v1949, 4
    %v1951 = vadd.f32 %v1949, %v1950
    %v1952 = vrot.slane %v1951, 2
    %v1953 = vadd.f32 %v1951, %v1952
    %v1954 = vrot.slane %v1953, 1
    %v1955 = vadd.f32 %v1953, %v1954
    %v1956 = vsel %vm321, %v1792, 0.0
    %v1957 = vrot.slane %v1956, 4
    %v1958 = vadd.f32 %v1956, %v1957
    %v1959 = vrot.slane %v1958, 2
    %v1960 = vadd.f32 %v1958, %v1959
    %v1961 = vrot.slane %v1960, 1
    %v1962 = vadd.f32 %v1960, %v1961
    %v1963 = vsel %vm321, %v1793, 0.0
    %v1964 = vrot.slane %v1963, 4
    %v1965 = vadd.f32 %v1963, %v1964
    %v1966 = vrot.slane %v1965, 2
    %v1967 = vadd.f32 %v1965, %v1966
    %v1968 = vrot.slane %v1967, 1
    %v1969 = vadd.f32 %v1967, %v1968
    %v1970 = vsel %vm321, %v1794, 0.0
    %v1971 = vrot.slane %v1970, 4
    %v1972 = vadd.f32 %v1970, %v1971
    %v1973 = vrot.slane %v1972, 2
    %v1974 = vadd.f32 %v1972, %v1973
    %v1975 = vrot.slane %v1974, 1
    %v1976 = vadd.f32 %v1974, %v1975
    %v1977 = vsel %vm321, %v1795, 0.0
    %v1978 = vrot.slane %v1977, 4
    %v1979 = vadd.f32 %v1977, %v1978
    %v1980 = vrot.slane %v1979, 2
    %v1981 = vadd.f32 %v1979, %v1980
    %v1982 = vrot.slane %v1981, 1
    %v1983 = vadd.f32 %v1981, %v1982
    %v1984 = vsel %vm321, %v1796, 0.0
    %v1985 = vrot.slane %v1984, 4
    %v1986 = vadd.f32 %v1984, %v1985
    %v1987 = vrot.slane %v1986, 2
    %v1988 = vadd.f32 %v1986, %v1987
    %v1989 = vrot.slane %v1988, 1
    %v1990 = vadd.f32 %v1988, %v1989
    %v1991 = vsel %vm321, %v1797, 0.0
    %v1992 = vrot.slane %v1991, 4
    %v1993 = vadd.f32 %v1991, %v1992
    %v1994 = vrot.slane %v1993, 2
    %v1995 = vadd.f32 %v1993, %v1994
    %v1996 = vrot.slane %v1995, 1
    %v1997 = vadd.f32 %v1995, %v1996
    %v1998 = vsel %vm321, %v1798, 0.0
    %v1999 = vrot.slane %v1998, 4
    %v2000 = vadd.f32 %v1998, %v1999
    %v2001 = vrot.slane %v2000, 2
    %v2002 = vadd.f32 %v2000, %v2001
    %v2003 = vrot.slane %v2002, 1
    %v2004 = vadd.f32 %v2002, %v2003
    %v2005 = vsel %vm321, %v1799, 0.0
    %v2006 = vrot.slane %v2005, 4
    %v2007 = vadd.f32 %v2005, %v2006
    %v2008 = vrot.slane %v2007, 2
    %v2009 = vadd.f32 %v2007, %v2008
    %v2010 = vrot.slane %v2009, 1
    %v2011 = vadd.f32 %v2009, %v2010
    %v2012 = vsel %vm321, %v1800, 0.0
    %v2013 = vrot.slane %v2012, 4
    %v2014 = vadd.f32 %v2012, %v2013
    %v2015 = vrot.slane %v2014, 2
    %v2016 = vadd.f32 %v2014, %v2015
    %v2017 = vrot.slane %v2016, 1
    %v2018 = vadd.f32 %v2016, %v2017
    %v2019 = vsel %vm321, %v1801, 0.0
    %v2020 = vrot.slane %v2019, 4
    %v2021 = vadd.f32 %v2019, %v2020
    %v2022 = vrot.slane %v2021, 2
    %v2023 = vadd.f32 %v2021, %v2022
    %v2024 = vrot.slane %v2023, 1
    %v2025 = vadd.f32 %v2023, %v2024
    %vm2058 = vcmask 1041409
    %v2059 = vsel %vm2058, %v1815, %v1808
    %vm2060 = vcmask 1042434
    %v2061 = vsel %vm2060, %v1822, %v2059
    %vm2062 = vcmask 1043459
    %v2063 = vsel %vm2062, %v1829, %v2061
    %vm2064 = vcmask 1044484
    %v2065 = vsel %vm2064, %v1836, %v2063
    %vm2066 = vcmask 1045509
    %v2067 = vsel %vm2066, %v1843, %v2065
    %vm2068 = vcmask 1046534
    %v2069 = vsel %vm2068, %v1850, %v2067
    %vm2070 = vcmask 1047559
    %v2071 = vsel %vm2070, %v1857, %v2069
    %v2072 = vsel %vm2058, %v1871, %v1864
    %v2073 = vsel %vm2060, %v1878, %v2072
    %v2074 = vsel %vm2062, %v1885, %v2073
    %v2075 = vsel %vm2064, %v1892, %v2074
    %v2076 = vsel %vm2066, %v1899, %v2075
    %v2077 = vsel %vm2068, %v1906, %v2076
    %v2078 = vsel %vm2070, %v1913, %v2077
    %v2079 = vsel %vm2058, %v1927, %v1920
    %v2080 = vsel %vm2060, %v1934, %v2079
    %v2081 = vsel %vm2062, %v1941, %v2080
    %v2082 = vsel %vm2064, %v1948, %v2081
    %v2083 = vsel %vm2066, %v1955, %v2082
    %v2084 = vsel %vm2068, %v1962, %v2083
    %v2085 = vsel %vm2070, %v1969, %v2084
    %v2086 = vsel %vm2058, %v1983, %v1976
    %v2087 = vsel %vm2060, %v1990, %v2086
    %v2088 = vsel %vm2062, %v1997, %v2087
    %v2089 = vsel %vm2064, %v2004, %v2088
    %v2090 = vsel %vm2066, %v2011, %v2089
    %v2091 = vsel %vm2068, %v2018, %v2090
    %v2092 = vsel %vm2070, %v2025, %v2091
    %2093 = vrot.lane.b32.xlu0 %v2071, 96
    %v2094 = vpop.permute.xlu0 %2093
    %2095 = vrot.lane.b32.xlu0 %v2078, 96
    %v2096 = vpop.permute.xlu0 %2095
    %2097 = vrot.lane.b32.xlu0 %v2085, 96
    %v2098 = vpop.permute.xlu0 %2097
    %2099 = vrot.lane.b32.xlu0 %v2092, 96
    %v2100 = vpop.permute.xlu0 %2099
    %2105 = vst.msk [vmem:[#allocation2] sm:$0xff] %vm67, %v2094
    %2106 = vst.msk [vmem:[#allocation2 + $0x8] sm:$0xff] %vm67, %v2096
    %2107 = vst.msk [vmem:[#allocation2 + $0x10] sm:$0xff] %vm67, %v2098
    %2108 = vst.msk [vmem:[#allocation2 + $0x18] sm:$0xff] %vm67, %v2100
    %v2109 = vlaneseq
    %v2110 = vshrl.u32 %v2109, 7
    %v2111 = vlaneseq
    %v2112 = vand.u32 %v2111, 127
    %vm2113 = vcmp.eq.s32.totalorder %v2110, %v2112
    %v2114 = vsel %vm2113, 1, 0
    %v2115 = vcvt.s32.f32 %v2114
    %v2117 = vsel %vm531, %v2115, 0
    %2119 = vmatpush.xpose.msra.mxu0 %v1603
    %2120 = vmatpush.xpose.msra.mxu0 %v1600
    %2121 = vmatpush.xpose.msra.mxu0 %v1597
    %2122 = vmatpush.xpose.msra.mxu0 %v1594
    %2123 = vmatpush.xpose.msra.mxu0 %v1591
    %2124 = vmatpush.xpose.msra.mxu0 %v1588
    %2125 = vmatpush.xpose.msra.mxu0 %v1585
    %2126 = vmatpush.xpose.msra.mxu0 %v1582
    %2127 = vmatpush.xpose.msra.mxu0 %v1579
    %2128 = vmatpush.xpose.msra.mxu0 %v1576
    %2129 = vmatpush.xpose.msra.mxu0 %v1573
    %2130 = vmatpush.xpose.msra.mxu0 %v1570
    %2131 = vmatpush.xpose.msra.mxu0 %v1567
    %2132 = vmatpush.xpose.msra.mxu0 %v1564
    %2133 = vmatpush.xpose.msra.mxu0 %v1561
    %2134 = vmatpush.xpose.msra.mxu0 %v1558
    %2135 = vmatmul.f32.gmra.mxu0 %v2117
    %v2136 = vpop.f32.mrf.mxu0
    %v2137 = vadd.f32 0.0, %v2136
    %2138 = vdwg.mxu0
    %2139 = vmatpush.xpose.msra.mxu0 %v1651
    %2140 = vmatpush.xpose.msra.mxu0 %v1648
    %2141 = vmatpush.xpose.msra.mxu0 %v1645
    %2142 = vmatpush.xpose.msra.mxu0 %v1642
    %2143 = vmatpush.xpose.msra.mxu0 %v1639
    %2144 = vmatpush.xpose.msra.mxu0 %v1636
    %2145 = vmatpush.xpose.msra.mxu0 %v1633
    %2146 = vmatpush.xpose.msra.mxu0 %v1630
    %2147 = vmatpush.xpose.msra.mxu0 %v1627
    %2148 = vmatpush.xpose.msra.mxu0 %v1624
    %2149 = vmatpush.xpose.msra.mxu0 %v1621
    %2150 = vmatpush.xpose.msra.mxu0 %v1618
    %2151 = vmatpush.xpose.msra.mxu0 %v1615
    %2152 = vmatpush.xpose.msra.mxu0 %v1612
    %2153 = vmatpush.xpose.msra.mxu0 %v1609
    %2154 = vmatpush.xpose.msra.mxu0 %v1606
    %2155 = vmatmul.f32.gmra.mxu0 %v2117
    %v2156 = vpop.f32.mrf.mxu0
    %v2157 = vadd.f32 0.0, %v2156
    %2158 = vdwg.mxu0
    %v2161 = vrot.slane %v2157, 4
    %v2162 = vsel %vm1653, %v2137, %v2161
    %2164 = vst [vmem:[#allocation4] sm:$0xff] %v2162
    // Predicated region
    $region26: #{tpu_custom_call.1} parent=1 // pred_check
      _
    $region27: #{tpu_custom_call.1} parent=1 // pred_check_branch
      %2166 = sbr.rel (0) target = $region29
    $region28: #{tpu_custom_call.1} parent=1 // pred_region
      %2168 = vsyncadd [#allocation3], 0
      %s2169 = sshll.u32 [#allocation2], 4
      %s2170 = int_to_ptr.vmem [resolvable:$true] %s2169
      %s2171 = sshll.u32 %s6, 4
      %s2172 = int_to_ptr.hbm [resolvable:$true] %s2171
      %2177 = dma.vmem_to_hbm [thread:$0]  %s2170, 512, %s2172, [#allocation3], 128, 128, 8
    $region29: #{tpu_custom_call.1} parent=1 // pred_fallthru
      _
    // Predicated region
    $region30: #{tpu_custom_call.1} parent=1 // pred_check
      _
    $region31: #{tpu_custom_call.1} parent=1 // pred_check_branch
      %2179 = sbr.rel (0) target = $region33
    $region32: #{tpu_custom_call.1} parent=1 // pred_region
      %2181 = vsyncadd [#allocation5], 0
      %s2183 = sshll.u32 [#allocation4], 4
      %s2184 = int_to_ptr.vmem [resolvable:$true] %s2183
      %s2185 = sshll.u32 %s7, 4
      %s2186 = int_to_ptr.hbm [resolvable:$true] %s2185
      %2188 = dma.vmem_to_hbm [thread:$0]  %s2184, 128, %s2186, [#allocation5]
    $region33: #{tpu_custom_call.1} parent=1 // pred_fallthru
      _
    // Predicated region
    $region34: #{tpu_custom_call.1} parent=1 // pred_check
      _
    $region35: #{tpu_custom_call.1} parent=1 // pred_check_branch
      %2190 = sbr.rel (0) target = $region37
    $region36: #{tpu_custom_call.1} parent=1 // pred_region
      %2192 = dma.done [#allocation3], 512
    $region37: #{tpu_custom_call.1} parent=1 // pred_fallthru
      _
    // Predicated region
    $region38: #{tpu_custom_call.1} parent=1 // pred_check
      _
    $region39: #{tpu_custom_call.1} parent=1 // pred_check_branch
      %2194 = sbr.rel (0) target = $region41
    $region40: #{tpu_custom_call.1} parent=1 // pred_region
      %2196 = dma.done [#allocation5], 128
    $region41: #{tpu_custom_call.1} parent=1 // pred_fallthru
      _
    %2197 = vsyncpa [#allocation3], 1
    %2198 = vsyncpa [#allocation5], 1

</llo_original>
